<compile_context>
chip_gen: v6e
topology: v6e:2x2x1
jax: 0.10.0
libtpu: 0.0.40
codegen_flags: <defaults>
</compile_context>

<pallas_src>
import functools
import math

import jax
import jax.numpy as jnp
from jax.experimental import pallas as pl
from jax.experimental.pallas import tpu as pltpu

_VMEM_LIMIT = 32 * 1024 * 1024  # safe on v5e/v6e (128 MiB) and v7x (64 MiB)


# ----------------------------------------------------------------------------
# Fused whole-forward kernel: one batch element per grid step.
# ----------------------------------------------------------------------------
def _encdec_kernel(xp_ref, base_ref, pw_ref, pb_ref,
                   g1_ref, b1_ref, qkvw_ref, qkvb_ref,
                   pjw_ref, pjb_ref, g2_ref, b2_ref,
                   f1w_ref, f1b_ref, f2w_ref, f2b_ref,
                   gf_ref, bf_ref, dw_ref, db_ref,
                   o_ref, *, heads, hd, n_patches, t_valid, eps, scale):
    D = heads * hd

    def ln(x, g, b):
        mu = jnp.mean(x, axis=-1, keepdims=True)
        var = jnp.mean(jnp.square(x - mu), axis=-1, keepdims=True)
        return (x - mu) * jax.lax.rsqrt(var + eps) * g + b

    def mm(x, w_ref, b_ref):
        # bf16 operands on the MXU, f32 accumulate.
        return jnp.dot(x.astype(jnp.bfloat16), w_ref[...],
                       preferred_element_type=jnp.float32) + b_ref[...]

    # --- patch embedding (p x p stride-p conv as a matmul) ------------------
    tok_p = mm(xp_ref[0], pw_ref, pb_ref)                         # [N, D] f32

    # --- add positional embedding / cls token / padding ---------------------
    # base rows: 0..N-1 = pos_emb[1..N], N = cls_tok + pos_emb[0], rest 0.
    base = base_ref[...]                                          # [T_pad, D]
    x0 = jnp.concatenate([base[:n_patches] + tok_p, base[n_patches:]], axis=0)

    # --- transformer block (pre-norm) ----------------------------------------
    qkv = mm(ln(x0, g1_ref[...], b1_ref[...]), qkvw_ref, qkvb_ref)  # [T_pad, 3D]

    t_pad = x0.shape[0]
    col = jax.lax.broadcasted_iota(jnp.int32, (t_pad, t_pad), 1)
    key_mask = col < t_valid                    # mask padded key tokens only

    head_out = []
    for h in range(heads):                      # unrolled; heads is small
        q = qkv[:, h * hd:(h + 1) * hd].astype(jnp.bfloat16)
        k = qkv[:, D + h * hd:D + (h + 1) * hd].astype(jnp.bfloat16)
        v = qkv[:, 2 * D + h * hd:2 * D + (h + 1) * hd].astype(jnp.bfloat16)
        # q @ k^T via dot_general contracting over hd (no explicit transpose).
        s = jax.lax.dot_general(q, k, (((1,), (1,)), ((), ())),
                                preferred_element_type=jnp.float32) * scale
        s = jnp.where(key_mask, s, -1e30)
        m = jnp.max(s, axis=-1, keepdims=True)
        p = jnp.exp(s - m)
        p = p * pl.reciprocal(jnp.sum(p, axis=-1, keepdims=True), approx=True)
        head_out.append(jnp.dot(p.astype(jnp.bfloat16), v,
                                preferred_element_type=jnp.float32))
    attn = jnp.concatenate(head_out, axis=-1)                     # [T_pad, D]

    x1 = x0 + mm(attn, pjw_ref, pjb_ref)                          # residual 1

    h1 = mm(ln(x1, g2_ref[...], b2_ref[...]), f1w_ref, f1b_ref)
    # TODO(synk): tanh-approx GELU (EUP path); exact-erf nn.GELU differs ~1e-3.
    h1 = jax.nn.gelu(h1, approximate=True)
    x2 = x1 + mm(h1, f2w_ref, f2b_ref)                            # residual 2

    # --- final LayerNorm, drop cls/pad rows, decoder head --------------------
    feats = ln(x2[:n_patches], gf_ref[...], bf_ref[...])          # [N, D]
    o_ref[0] = mm(feats, dw_ref, db_ref).astype(o_ref.dtype)      # [N, 128]


# ----------------------------------------------------------------------------
# Parameter construction (deterministic, synthetic) + one-time preparation
# ----------------------------------------------------------------------------
def init_params(key, *, in_chans, patch, dim, heads, mlp_hidden, num_classes,
                num_tokens):
    ks = jax.random.split(key, 8)
    s = 0.02
    p = {}
    p["patch_w"] = s * jax.random.normal(ks[0], (in_chans * patch * patch, dim), jnp.float32)
    p["patch_b"] = jnp.zeros((dim,), jnp.float32)
    p["cls_tok"] = s * jax.random.normal(ks[1], (1, 1, dim), jnp.float32)
    p["pos_emb"] = s * jax.random.normal(ks[2], (1, num_tokens, dim), jnp.float32)
    p["ln1_g"] = jnp.ones((dim,), jnp.float32)
    p["ln1_b"] = jnp.zeros((dim,), jnp.float32)
    p["qkv_w"] = s * jax.random.normal(ks[3], (dim, 3 * dim), jnp.float32)
    p["qkv_b"] = jnp.zeros((3 * dim,), jnp.float32)
    p["proj_w"] = s * jax.random.normal(ks[4], (dim, dim), jnp.float32)
    p["proj_b"] = jnp.zeros((dim,), jnp.float32)
    p["ln2_g"] = jnp.ones((dim,), jnp.float32)
    p["ln2_b"] = jnp.zeros((dim,), jnp.float32)
    p["fc1_w"] = s * jax.random.normal(ks[5], (dim, mlp_hidden), jnp.float32)
    p["fc1_b"] = jnp.zeros((mlp_hidden,), jnp.float32)
    p["fc2_w"] = s * jax.random.normal(ks[6], (mlp_hidden, dim), jnp.float32)
    p["fc2_b"] = jnp.zeros((dim,), jnp.float32)
    p["lnf_g"] = jnp.ones((dim,), jnp.float32)
    p["lnf_b"] = jnp.zeros((dim,), jnp.float32)
    p["dec_w"] = s * jax.random.normal(ks[7], (dim, num_classes), jnp.float32)
    p["dec_b"] = jnp.zeros((num_classes,), jnp.float32)
    return p


def prepare_params(raw, *, dim, num_classes, num_tokens):
    """One-time prep outside the traced forward: bf16 weight casts, decoder
    lane padding, and the precomputed base-token table (pos emb + cls)."""
    n_patches = num_tokens - 1
    t_pad = ((num_tokens + 7) // 8) * 8
    nc_pad = ((num_classes + 127) // 128) * 128

    pos = raw["pos_emb"][0]                                       # [T, D]
    base = jnp.zeros((t_pad, dim), jnp.float32)
    base = base.at[:n_patches].set(pos[1:num_tokens])             # patch tokens
    base = base.at[n_patches].set(raw["cls_tok"][0, 0] + pos[0])  # cls token

    mlp_hidden = raw["fc1_w"].shape[1]
    p = {
        "base_tok": base,
        "patch_w": raw["patch_w"].astype(jnp.bfloat16),
        "patch_b": raw["patch_b"].reshape(1, dim),
        "ln1_g": raw["ln1_g"].reshape(1, dim),
        "ln1_b": raw["ln1_b"].reshape(1, dim),
        "qkv_w": raw["qkv_w"].astype(jnp.bfloat16),
        "qkv_b": raw["qkv_b"].reshape(1, 3 * dim),
        "proj_w": raw["proj_w"].astype(jnp.bfloat16),
        "proj_b": raw["proj_b"].reshape(1, dim),
        "ln2_g": raw["ln2_g"].reshape(1, dim),
        "ln2_b": raw["ln2_b"].reshape(1, dim),
        "fc1_w": raw["fc1_w"].astype(jnp.bfloat16),
        "fc1_b": raw["fc1_b"].reshape(1, mlp_hidden),
        "fc2_w": raw["fc2_w"].astype(jnp.bfloat16),
        "fc2_b": raw["fc2_b"].reshape(1, dim),
        "lnf_g": raw["lnf_g"].reshape(1, dim),
        "lnf_b": raw["lnf_b"].reshape(1, dim),
        "dec_w": jnp.pad(raw["dec_w"],
                         ((0, 0), (0, nc_pad - num_classes))).astype(jnp.bfloat16),
        "dec_b": jnp.pad(raw["dec_b"], (0, nc_pad - num_classes)).reshape(1, nc_pad),
    }
    return p


# ----------------------------------------------------------------------------
# EncoderDecoder forward
# ----------------------------------------------------------------------------
def encoder_decoder_forward(prep, inputs, *, patch, dim, heads, num_classes):
    """inputs: NCHW float32 [B, C, H, W] -> masks [B, num_classes, H, W]."""
    B, C, H, W = inputs.shape
    nH, nW = H // patch, W // patch
    N = nH * nW
    T = N + 1                                   # + class token
    hd = dim // heads
    t_pad = prep["base_tok"].shape[0]
    nc_pad = prep["dec_w"].shape[1]
    mlp_hidden = prep["fc1_w"].shape[1]
    cpp = C * patch * patch

    # Patch extraction (layout only; feeds the fused kernel's patch-embed matmul).
    x = inputs.reshape(B, C, nH, patch, nW, patch)
    xp = jnp.transpose(x, (0, 2, 4, 1, 3, 5)).reshape(B, N, cpp)

    kernel = functools.partial(
        _encdec_kernel, heads=heads, hd=hd, n_patches=N,
        t_valid=T, eps=1e-6, scale=1.0 / math.sqrt(hd))

    def const_spec(shape):
        return pl.BlockSpec(shape, lambda b: (0,) * len(shape))

    logits = pl.pallas_call(
        kernel,
        out_shape=jax.ShapeDtypeStruct((B, N, nc_pad), jnp.float32),
        grid=(B,),
        in_specs=[
            pl.BlockSpec((1, N, cpp), lambda b: (b, 0, 0)),       # xp
            const_spec((t_pad, dim)),                             # base_tok
            const_spec((cpp, dim)), const_spec((1, dim)),         # patch
            const_spec((1, dim)), const_spec((1, dim)),           # ln1
            const_spec((dim, 3 * dim)), const_spec((1, 3 * dim)), # qkv
            const_spec((dim, dim)), const_spec((1, dim)),         # proj
            const_spec((1, dim)), const_spec((1, dim)),           # ln2
            const_spec((dim, mlp_hidden)), const_spec((1, mlp_hidden)),  # fc1
            const_spec((mlp_hidden, dim)), const_spec((1, dim)),  # fc2
            const_spec((1, dim)), const_spec((1, dim)),           # lnf
            const_spec((dim, nc_pad)), const_spec((1, nc_pad)),   # decoder
        ],
        out_specs=pl.BlockSpec((1, N, nc_pad), lambda b: (b, 0, 0)),
        compiler_params=pltpu.CompilerParams(
            dimension_semantics=("parallel",),
            vmem_limit_bytes=_VMEM_LIMIT),
    )(xp, prep["base_tok"],
      prep["patch_w"], prep["patch_b"],
      prep["ln1_g"], prep["ln1_b"], prep["qkv_w"], prep["qkv_b"],
      prep["proj_w"], prep["proj_b"], prep["ln2_g"], prep["ln2_b"],
      prep["fc1_w"], prep["fc1_b"], prep["fc2_w"], prep["fc2_b"],
      prep["lnf_g"], prep["lnf_b"], prep["dec_w"], prep["dec_b"])

    # neck is None

    # decoder tail: slice padded classes, NCHW, nearest-neighbor upsample via a
    # single broadcast+reshape (no jnp.repeat passes).
    logits = logits[:, :, :num_classes].reshape(B, nH, nW, num_classes)
    logits = jnp.transpose(logits, (0, 3, 1, 2))                  # [B, nc, nH, nW]
    # TODO(synk): bilinear interpolation not implemented; nearest-neighbor upsample used.
    masks = jnp.broadcast_to(
        logits[:, :, :, None, :, None],
        (B, num_classes, nH, patch, nW, patch)).reshape(B, num_classes, H, W)
    return masks


# ----------------------------------------------------------------------------
if __name__ == "__main__":
    B, C, H, W = 2, 3, 32, 32
    PATCH, DIM, HEADS, MLP_HIDDEN, NUM_CLASSES = 8, 32, 4, 64, 5
    nH, nW = H // PATCH, W // PATCH
    T = nH * nW + 1

    key = jax.random.PRNGKey(0)
    k_param, k_in = jax.random.split(key)
    raw_params = init_params(
        k_param, in_chans=C, patch=PATCH, dim=DIM, heads=HEADS,
        mlp_hidden=MLP_HIDDEN, num_classes=NUM_CLASSES, num_tokens=T,
    )
    prep = prepare_params(raw_params, dim=DIM, num_classes=NUM_CLASSES,
                          num_tokens=T)
    inputs = jax.random.normal(k_in, (B, C, H, W), jnp.float32)

    fwd = jax.jit(functools.partial(
        encoder_decoder_forward, patch=PATCH, dim=DIM,
        heads=HEADS, num_classes=NUM_CLASSES))
    masks = fwd(prep, inputs)
    jax.block_until_ready(masks)
    assert masks.shape == (B, NUM_CLASSES, H, W), masks.shape
    assert masks.dtype == jnp.float32
    assert bool(jnp.isfinite(masks).all())
    print("KERNEL_OK")
</pallas_src>

<mosaic_0001>
module attributes {stable_mosaic.version = 11 : i64} {
  func.func @_encdec_kernel(%arg0: i32, %arg1: memref<1x16x192xf32, #tpu.memory_space<vmem>>, %arg2: memref<24x32xf32, #tpu.memory_space<vmem>>, %arg3: memref<192x32xbf16, #tpu.memory_space<vmem>>, %arg4: memref<1x32xf32, #tpu.memory_space<vmem>>, %arg5: memref<1x32xf32, #tpu.memory_space<vmem>>, %arg6: memref<1x32xf32, #tpu.memory_space<vmem>>, %arg7: memref<32x96xbf16, #tpu.memory_space<vmem>>, %arg8: memref<1x96xf32, #tpu.memory_space<vmem>>, %arg9: memref<32x32xbf16, #tpu.memory_space<vmem>>, %arg10: memref<1x32xf32, #tpu.memory_space<vmem>>, %arg11: memref<1x32xf32, #tpu.memory_space<vmem>>, %arg12: memref<1x32xf32, #tpu.memory_space<vmem>>, %arg13: memref<32x64xbf16, #tpu.memory_space<vmem>>, %arg14: memref<1x64xf32, #tpu.memory_space<vmem>>, %arg15: memref<64x32xbf16, #tpu.memory_space<vmem>>, %arg16: memref<1x32xf32, #tpu.memory_space<vmem>>, %arg17: memref<1x32xf32, #tpu.memory_space<vmem>>, %arg18: memref<1x32xf32, #tpu.memory_space<vmem>>, %arg19: memref<32x128xbf16, #tpu.memory_space<vmem>>, %arg20: memref<1x128xf32, #tpu.memory_space<vmem>>, %arg21: memref<1x16x128xf32, #tpu.memory_space<vmem>>) attributes {dimension_semantics = [#tpu.dimension_semantics<parallel>], iteration_bounds = array<i64: 2>, scalar_prefetch = 0 : i64, scratch_operands = 0 : i64, tpu.core_type = #tpu.core_type<tc>, window_params = [{transform_indices = @transform_0, window_bounds = array<i64: 1, 16, 192>}, {pipeline_mode = #tpu.pipeline_mode<synchronous>, transform_indices = @transform_1, window_bounds = array<i64: 24, 32>}, {pipeline_mode = #tpu.pipeline_mode<synchronous>, transform_indices = @transform_2, window_bounds = array<i64: 192, 32>}, {pipeline_mode = #tpu.pipeline_mode<synchronous>, transform_indices = @transform_3, window_bounds = array<i64: 1, 32>}, {pipeline_mode = #tpu.pipeline_mode<synchronous>, transform_indices = @transform_4, window_bounds = array<i64: 1, 32>}, {pipeline_mode = #tpu.pipeline_mode<synchronous>, transform_indices = @transform_5, window_bounds = array<i64: 1, 32>}, {pipeline_mode = #tpu.pipeline_mode<synchronous>, transform_indices = @transform_6, window_bounds = array<i64: 32, 96>}, {pipeline_mode = #tpu.pipeline_mode<synchronous>, transform_indices = @transform_7, window_bounds = array<i64: 1, 96>}, {pipeline_mode = #tpu.pipeline_mode<synchronous>, transform_indices = @transform_8, window_bounds = array<i64: 32, 32>}, {pipeline_mode = #tpu.pipeline_mode<synchronous>, transform_indices = @transform_9, window_bounds = array<i64: 1, 32>}, {pipeline_mode = #tpu.pipeline_mode<synchronous>, transform_indices = @transform_10, window_bounds = array<i64: 1, 32>}, {pipeline_mode = #tpu.pipeline_mode<synchronous>, transform_indices = @transform_11, window_bounds = array<i64: 1, 32>}, {pipeline_mode = #tpu.pipeline_mode<synchronous>, transform_indices = @transform_12, window_bounds = array<i64: 32, 64>}, {pipeline_mode = #tpu.pipeline_mode<synchronous>, transform_indices = @transform_13, window_bounds = array<i64: 1, 64>}, {pipeline_mode = #tpu.pipeline_mode<synchronous>, transform_indices = @transform_14, window_bounds = array<i64: 64, 32>}, {pipeline_mode = #tpu.pipeline_mode<synchronous>, transform_indices = @transform_15, window_bounds = array<i64: 1, 32>}, {pipeline_mode = #tpu.pipeline_mode<synchronous>, transform_indices = @transform_16, window_bounds = array<i64: 1, 32>}, {pipeline_mode = #tpu.pipeline_mode<synchronous>, transform_indices = @transform_17, window_bounds = array<i64: 1, 32>}, {pipeline_mode = #tpu.pipeline_mode<synchronous>, transform_indices = @transform_18, window_bounds = array<i64: 32, 128>}, {pipeline_mode = #tpu.pipeline_mode<synchronous>, transform_indices = @transform_19, window_bounds = array<i64: 1, 128>}, {transform_indices = @transform_20, window_bounds = array<i64: 1, 16, 128>}]} {
    %c0 = arith.constant 0 : index
    %c0_0 = arith.constant 0 : index
    %c0_1 = arith.constant 0 : index
    %0 = vector.load %arg1[%c0, %c0_0, %c0_1] : memref<1x16x192xf32, #tpu.memory_space<vmem>>, vector<1x16x192xf32>
    %1 = vector.shape_cast %0 : vector<1x16x192xf32> to vector<16x192xf32>
    %2 = arith.truncf %1 : vector<16x192xf32> to vector<16x192xbf16>
    %c0_2 = arith.constant 0 : index
    %c0_3 = arith.constant 0 : index
    %3 = vector.load %arg3[%c0_2, %c0_3] : memref<192x32xbf16, #tpu.memory_space<vmem>>, vector<192x32xbf16>
    %cst = arith.constant dense<0.000000e+00> : vector<16x32xf32>
    %4 = tpu.matmul %2, %3, %cst {dimension_numbers = #tpu.dot_dimension_numbers<[1], [0], [0], [1], [0, 0, 1, 1], [], []>} : vector<16x192xbf16>, vector<192x32xbf16>, vector<16x32xf32> -> vector<16x32xf32>
    %c0_4 = arith.constant 0 : index
    %c0_5 = arith.constant 0 : index
    %5 = vector.load %arg4[%c0_4, %c0_5] : memref<1x32xf32, #tpu.memory_space<vmem>>, vector<1x32xf32>
    %6 = vector.broadcast %5 : vector<1x32xf32> to vector<16x32xf32>
    %7 = arith.addf %4, %6 : vector<16x32xf32>
    %c0_6 = arith.constant 0 : index
    %c0_7 = arith.constant 0 : index
    %8 = vector.load %arg2[%c0_6, %c0_7] : memref<24x32xf32, #tpu.memory_space<vmem>>, vector<24x32xf32>
    %9 = vector.extract_strided_slice %8 {offsets = [0, 0], sizes = [16, 32], strides = [1, 1]} : vector<24x32xf32> to vector<16x32xf32>
    %10 = arith.addf %9, %7 : vector<16x32xf32>
    %11 = vector.extract_strided_slice %8 {offsets = [16, 0], sizes = [8, 32], strides = [1, 1]} : vector<24x32xf32> to vector<8x32xf32>
    %12 = tpu.concatenate %10, %11 in 0 : vector<16x32xf32>, vector<8x32xf32> -> vector<24x32xf32>
    %c0_8 = arith.constant 0 : index
    %c0_9 = arith.constant 0 : index
    %13 = vector.load %arg5[%c0_8, %c0_9] : memref<1x32xf32, #tpu.memory_space<vmem>>, vector<1x32xf32>
    %c0_10 = arith.constant 0 : index
    %c0_11 = arith.constant 0 : index
    %14 = vector.load %arg6[%c0_10, %c0_11] : memref<1x32xf32, #tpu.memory_space<vmem>>, vector<1x32xf32>
    %cst_12 = arith.constant dense<0.000000e+00> : vector<24xf32>
    %15 = vector.multi_reduction <add>, %12, %cst_12 [1] : vector<24x32xf32> to vector<24xf32>
    %16 = vector.shape_cast %15 : vector<24xf32> to vector<24x1xf32>
    %cst_13 = arith.constant 3.200000e+01 : f32
    %17 = vector.broadcast %cst_13 : f32 to vector<24x1xf32>
    %18 = arith.divf %16, %17 : vector<24x1xf32>
    %19 = vector.broadcast %18 : vector<24x1xf32> to vector<24x32xf32>
    %20 = arith.subf %12, %19 : vector<24x32xf32>
    %21 = arith.mulf %20, %20 : vector<24x32xf32>
    %cst_14 = arith.constant dense<0.000000e+00> : vector<24xf32>
    %22 = vector.multi_reduction <add>, %21, %cst_14 [1] : vector<24x32xf32> to vector<24xf32>
    %23 = vector.shape_cast %22 : vector<24xf32> to vector<24x1xf32>
    %cst_15 = arith.constant 3.200000e+01 : f32
    %24 = vector.broadcast %cst_15 : f32 to vector<24x1xf32>
    %25 = arith.divf %23, %24 : vector<24x1xf32>
    %26 = vector.broadcast %18 : vector<24x1xf32> to vector<24x32xf32>
    %27 = arith.subf %12, %26 : vector<24x32xf32>
    %cst_16 = arith.constant 9.99999997E-7 : f32
    %28 = vector.broadcast %cst_16 : f32 to vector<24x1xf32>
    %29 = arith.addf %25, %28 : vector<24x1xf32>
    %30 = math.rsqrt %29 : vector<24x1xf32>
    %31 = vector.broadcast %30 : vector<24x1xf32> to vector<24x32xf32>
    %32 = arith.mulf %27, %31 : vector<24x32xf32>
    %33 = vector.broadcast %13 : vector<1x32xf32> to vector<24x32xf32>
    %34 = arith.mulf %32, %33 : vector<24x32xf32>
    %35 = vector.broadcast %14 : vector<1x32xf32> to vector<24x32xf32>
    %36 = arith.addf %34, %35 : vector<24x32xf32>
    %37 = arith.truncf %36 : vector<24x32xf32> to vector<24x32xbf16>
    %c0_17 = arith.constant 0 : index
    %c0_18 = arith.constant 0 : index
    %38 = vector.load %arg7[%c0_17, %c0_18] : memref<32x96xbf16, #tpu.memory_space<vmem>>, vector<32x96xbf16>
    %cst_19 = arith.constant dense<0.000000e+00> : vector<24x96xf32>
    %39 = tpu.matmul %37, %38, %cst_19 {dimension_numbers = #tpu.dot_dimension_numbers<[1], [0], [0], [1], [0, 0, 1, 1], [], []>} : vector<24x32xbf16>, vector<32x96xbf16>, vector<24x96xf32> -> vector<24x96xf32>
    %c0_20 = arith.constant 0 : index
    %c0_21 = arith.constant 0 : index
    %40 = vector.load %arg8[%c0_20, %c0_21] : memref<1x96xf32, #tpu.memory_space<vmem>>, vector<1x96xf32>
    %41 = vector.broadcast %40 : vector<1x96xf32> to vector<24x96xf32>
    %42 = arith.addf %39, %41 : vector<24x96xf32>
    %43 = tpu.iota {dimensions = array<i32: 1>} : vector<24x24xi32>
    %c17_i32 = arith.constant 17 : i32
    %44 = vector.broadcast %c17_i32 : i32 to vector<24x24xi32>
    %45 = arith.cmpi slt, %43, %44 : vector<24x24xi32>
    %46 = vector.extract_strided_slice %42 {offsets = [0, 0], sizes = [24, 8], strides = [1, 1]} : vector<24x96xf32> to vector<24x8xf32>
    %47 = arith.truncf %46 : vector<24x8xf32> to vector<24x8xbf16>
    %48 = vector.extract_strided_slice %42 {offsets = [0, 32], sizes = [24, 8], strides = [1, 1]} : vector<24x96xf32> to vector<24x8xf32>
    %49 = arith.truncf %48 : vector<24x8xf32> to vector<24x8xbf16>
    %50 = vector.extract_strided_slice %42 {offsets = [0, 64], sizes = [24, 8], strides = [1, 1]} : vector<24x96xf32> to vector<24x8xf32>
    %51 = arith.truncf %50 : vector<24x8xf32> to vector<24x8xbf16>
    %cst_22 = arith.constant dense<0.000000e+00> : vector<24x24xf32>
    %52 = tpu.matmul %47, %49, %cst_22 {dimension_numbers = #tpu.dot_dimension_numbers<[1], [1], [0], [0], [0, 0, 1, 0], [], []>} : vector<24x8xbf16>, vector<24x8xbf16>, vector<24x24xf32> -> vector<24x24xf32>
    %cst_23 = arith.constant 0.353553385 : f32
    %53 = vector.broadcast %cst_23 : f32 to vector<24x24xf32>
    %54 = arith.mulf %52, %53 : vector<24x24xf32>
    %cst_24 = arith.constant -1.000000e+30 : f32
    %55 = vector.broadcast %cst_24 : f32 to vector<24x24xf32>
    %56 = arith.select %45, %54, %55 : vector<24x24xi1>, vector<24x24xf32>
    %cst_25 = arith.constant dense<0xFF800000> : vector<24xf32>
    %57 = vector.multi_reduction <maximumf>, %56, %cst_25 [1] : vector<24x24xf32> to vector<24xf32>
    %58 = vector.shape_cast %57 : vector<24xf32> to vector<24x1xf32>
    %59 = vector.broadcast %58 : vector<24x1xf32> to vector<24x24xf32>
    %60 = arith.subf %56, %59 : vector<24x24xf32>
    %61 = math.exp %60 : vector<24x24xf32>
    %cst_26 = arith.constant dense<0.000000e+00> : vector<24xf32>
    %62 = vector.multi_reduction <add>, %61, %cst_26 [1] : vector<24x24xf32> to vector<24xf32>
    %63 = vector.shape_cast %62 : vector<24xf32> to vector<24x1xf32>
    %64 = tpu.reciprocal %63 {approx = true} : vector<24x1xf32> -> vector<24x1xf32>
    %65 = vector.broadcast %64 : vector<24x1xf32> to vector<24x24xf32>
    %66 = arith.mulf %61, %65 : vector<24x24xf32>
    %67 = arith.truncf %66 : vector<24x24xf32> to vector<24x24xbf16>
    %cst_27 = arith.constant dense<0.000000e+00> : vector<24x8xf32>
    %68 = tpu.matmul %67, %51, %cst_27 {dimension_numbers = #tpu.dot_dimension_numbers<[1], [0], [0], [1], [0, 0, 1, 1], [], []>} : vector<24x24xbf16>, vector<24x8xbf16>, vector<24x8xf32> -> vector<24x8xf32>
    %69 = vector.extract_strided_slice %42 {offsets = [0, 8], sizes = [24, 8], strides = [1, 1]} : vector<24x96xf32> to vector<24x8xf32>
    %70 = arith.truncf %69 : vector<24x8xf32> to vector<24x8xbf16>
    %71 = vector.extract_strided_slice %42 {offsets = [0, 40], sizes = [24, 8], strides = [1, 1]} : vector<24x96xf32> to vector<24x8xf32>
    %72 = arith.truncf %71 : vector<24x8xf32> to vector<24x8xbf16>
    %73 = vector.extract_strided_slice %42 {offsets = [0, 72], sizes = [24, 8], strides = [1, 1]} : vector<24x96xf32> to vector<24x8xf32>
    %74 = arith.truncf %73 : vector<24x8xf32> to vector<24x8xbf16>
    %cst_28 = arith.constant dense<0.000000e+00> : vector<24x24xf32>
    %75 = tpu.matmul %70, %72, %cst_28 {dimension_numbers = #tpu.dot_dimension_numbers<[1], [1], [0], [0], [0, 0, 1, 0], [], []>} : vector<24x8xbf16>, vector<24x8xbf16>, vector<24x24xf32> -> vector<24x24xf32>
    %cst_29 = arith.constant 0.353553385 : f32
    %76 = vector.broadcast %cst_29 : f32 to vector<24x24xf32>
    %77 = arith.mulf %75, %76 : vector<24x24xf32>
    %cst_30 = arith.constant -1.000000e+30 : f32
    %78 = vector.broadcast %cst_30 : f32 to vector<24x24xf32>
    %79 = arith.select %45, %77, %78 : vector<24x24xi1>, vector<24x24xf32>
    %cst_31 = arith.constant dense<0xFF800000> : vector<24xf32>
    %80 = vector.multi_reduction <maximumf>, %79, %cst_31 [1] : vector<24x24xf32> to vector<24xf32>
    %81 = vector.shape_cast %80 : vector<24xf32> to vector<24x1xf32>
    %82 = vector.broadcast %81 : vector<24x1xf32> to vector<24x24xf32>
    %83 = arith.subf %79, %82 : vector<24x24xf32>
    %84 = math.exp %83 : vector<24x24xf32>
    %cst_32 = arith.constant dense<0.000000e+00> : vector<24xf32>
    %85 = vector.multi_reduction <add>, %84, %cst_32 [1] : vector<24x24xf32> to vector<24xf32>
    %86 = vector.shape_cast %85 : vector<24xf32> to vector<24x1xf32>
    %87 = tpu.reciprocal %86 {approx = true} : vector<24x1xf32> -> vector<24x1xf32>
    %88 = vector.broadcast %87 : vector<24x1xf32> to vector<24x24xf32>
    %89 = arith.mulf %84, %88 : vector<24x24xf32>
    %90 = arith.truncf %89 : vector<24x24xf32> to vector<24x24xbf16>
    %cst_33 = arith.constant dense<0.000000e+00> : vector<24x8xf32>
    %91 = tpu.matmul %90, %74, %cst_33 {dimension_numbers = #tpu.dot_dimension_numbers<[1], [0], [0], [1], [0, 0, 1, 1], [], []>} : vector<24x24xbf16>, vector<24x8xbf16>, vector<24x8xf32> -> vector<24x8xf32>
    %92 = vector.extract_strided_slice %42 {offsets = [0, 16], sizes = [24, 8], strides = [1, 1]} : vector<24x96xf32> to vector<24x8xf32>
    %93 = arith.truncf %92 : vector<24x8xf32> to vector<24x8xbf16>
    %94 = vector.extract_strided_slice %42 {offsets = [0, 48], sizes = [24, 8], strides = [1, 1]} : vector<24x96xf32> to vector<24x8xf32>
    %95 = arith.truncf %94 : vector<24x8xf32> to vector<24x8xbf16>
    %96 = vector.extract_strided_slice %42 {offsets = [0, 80], sizes = [24, 8], strides = [1, 1]} : vector<24x96xf32> to vector<24x8xf32>
    %97 = arith.truncf %96 : vector<24x8xf32> to vector<24x8xbf16>
    %cst_34 = arith.constant dense<0.000000e+00> : vector<24x24xf32>
    %98 = tpu.matmul %93, %95, %cst_34 {dimension_numbers = #tpu.dot_dimension_numbers<[1], [1], [0], [0], [0, 0, 1, 0], [], []>} : vector<24x8xbf16>, vector<24x8xbf16>, vector<24x24xf32> -> vector<24x24xf32>
    %cst_35 = arith.constant 0.353553385 : f32
    %99 = vector.broadcast %cst_35 : f32 to vector<24x24xf32>
    %100 = arith.mulf %98, %99 : vector<24x24xf32>
    %cst_36 = arith.constant -1.000000e+30 : f32
    %101 = vector.broadcast %cst_36 : f32 to vector<24x24xf32>
    %102 = arith.select %45, %100, %101 : vector<24x24xi1>, vector<24x24xf32>
    %cst_37 = arith.constant dense<0xFF800000> : vector<24xf32>
    %103 = vector.multi_reduction <maximumf>, %102, %cst_37 [1] : vector<24x24xf32> to vector<24xf32>
    %104 = vector.shape_cast %103 : vector<24xf32> to vector<24x1xf32>
    %105 = vector.broadcast %104 : vector<24x1xf32> to vector<24x24xf32>
    %106 = arith.subf %102, %105 : vector<24x24xf32>
    %107 = math.exp %106 : vector<24x24xf32>
    %cst_38 = arith.constant dense<0.000000e+00> : vector<24xf32>
    %108 = vector.multi_reduction <add>, %107, %cst_38 [1] : vector<24x24xf32> to vector<24xf32>
    %109 = vector.shape_cast %108 : vector<24xf32> to vector<24x1xf32>
    %110 = tpu.reciprocal %109 {approx = true} : vector<24x1xf32> -> vector<24x1xf32>
    %111 = vector.broadcast %110 : vector<24x1xf32> to vector<24x24xf32>
    %112 = arith.mulf %107, %111 : vector<24x24xf32>
    %113 = arith.truncf %112 : vector<24x24xf32> to vector<24x24xbf16>
    %cst_39 = arith.constant dense<0.000000e+00> : vector<24x8xf32>
    %114 = tpu.matmul %113, %97, %cst_39 {dimension_numbers = #tpu.dot_dimension_numbers<[1], [0], [0], [1], [0, 0, 1, 1], [], []>} : vector<24x24xbf16>, vector<24x8xbf16>, vector<24x8xf32> -> vector<24x8xf32>
    %115 = vector.extract_strided_slice %42 {offsets = [0, 24], sizes = [24, 8], strides = [1, 1]} : vector<24x96xf32> to vector<24x8xf32>
    %116 = arith.truncf %115 : vector<24x8xf32> to vector<24x8xbf16>
    %117 = vector.extract_strided_slice %42 {offsets = [0, 56], sizes = [24, 8], strides = [1, 1]} : vector<24x96xf32> to vector<24x8xf32>
    %118 = arith.truncf %117 : vector<24x8xf32> to vector<24x8xbf16>
    %119 = vector.extract_strided_slice %42 {offsets = [0, 88], sizes = [24, 8], strides = [1, 1]} : vector<24x96xf32> to vector<24x8xf32>
    %120 = arith.truncf %119 : vector<24x8xf32> to vector<24x8xbf16>
    %cst_40 = arith.constant dense<0.000000e+00> : vector<24x24xf32>
    %121 = tpu.matmul %116, %118, %cst_40 {dimension_numbers = #tpu.dot_dimension_numbers<[1], [1], [0], [0], [0, 0, 1, 0], [], []>} : vector<24x8xbf16>, vector<24x8xbf16>, vector<24x24xf32> -> vector<24x24xf32>
    %cst_41 = arith.constant 0.353553385 : f32
    %122 = vector.broadcast %cst_41 : f32 to vector<24x24xf32>
    %123 = arith.mulf %121, %122 : vector<24x24xf32>
    %cst_42 = arith.constant -1.000000e+30 : f32
    %124 = vector.broadcast %cst_42 : f32 to vector<24x24xf32>
    %125 = arith.select %45, %123, %124 : vector<24x24xi1>, vector<24x24xf32>
    %cst_43 = arith.constant dense<0xFF800000> : vector<24xf32>
    %126 = vector.multi_reduction <maximumf>, %125, %cst_43 [1] : vector<24x24xf32> to vector<24xf32>
    %127 = vector.shape_cast %126 : vector<24xf32> to vector<24x1xf32>
    %128 = vector.broadcast %127 : vector<24x1xf32> to vector<24x24xf32>
    %129 = arith.subf %125, %128 : vector<24x24xf32>
    %130 = math.exp %129 : vector<24x24xf32>
    %cst_44 = arith.constant dense<0.000000e+00> : vector<24xf32>
    %131 = vector.multi_reduction <add>, %130, %cst_44 [1] : vector<24x24xf32> to vector<24xf32>
    %132 = vector.shape_cast %131 : vector<24xf32> to vector<24x1xf32>
    %133 = tpu.reciprocal %132 {approx = true} : vector<24x1xf32> -> vector<24x1xf32>
    %134 = vector.broadcast %133 : vector<24x1xf32> to vector<24x24xf32>
    %135 = arith.mulf %130, %134 : vector<24x24xf32>
    %136 = arith.truncf %135 : vector<24x24xf32> to vector<24x24xbf16>
    %cst_45 = arith.constant dense<0.000000e+00> : vector<24x8xf32>
    %137 = tpu.matmul %136, %120, %cst_45 {dimension_numbers = #tpu.dot_dimension_numbers<[1], [0], [0], [1], [0, 0, 1, 1], [], []>} : vector<24x24xbf16>, vector<24x8xbf16>, vector<24x8xf32> -> vector<24x8xf32>
    %138 = tpu.concatenate %68, %91, %114, %137 in 1 : vector<24x8xf32>, vector<24x8xf32>, vector<24x8xf32>, vector<24x8xf32> -> vector<24x32xf32>
    %139 = arith.truncf %138 : vector<24x32xf32> to vector<24x32xbf16>
    %c0_46 = arith.constant 0 : index
    %c0_47 = arith.constant 0 : index
    %140 = vector.load %arg9[%c0_46, %c0_47] : memref<32x32xbf16, #tpu.memory_space<vmem>>, vector<32x32xbf16>
    %cst_48 = arith.constant dense<0.000000e+00> : vector<24x32xf32>
    %141 = tpu.matmul %139, %140, %cst_48 {dimension_numbers = #tpu.dot_dimension_numbers<[1], [0], [0], [1], [0, 0, 1, 1], [], []>} : vector<24x32xbf16>, vector<32x32xbf16>, vector<24x32xf32> -> vector<24x32xf32>
    %c0_49 = arith.constant 0 : index
    %c0_50 = arith.constant 0 : index
    %142 = vector.load %arg10[%c0_49, %c0_50] : memref<1x32xf32, #tpu.memory_space<vmem>>, vector<1x32xf32>
    %143 = vector.broadcast %142 : vector<1x32xf32> to vector<24x32xf32>
    %144 = arith.addf %141, %143 : vector<24x32xf32>
    %145 = arith.addf %12, %144 : vector<24x32xf32>
    %c0_51 = arith.constant 0 : index
    %c0_52 = arith.constant 0 : index
    %146 = vector.load %arg11[%c0_51, %c0_52] : memref<1x32xf32, #tpu.memory_space<vmem>>, vector<1x32xf32>
    %c0_53 = arith.constant 0 : index
    %c0_54 = arith.constant 0 : index
    %147 = vector.load %arg12[%c0_53, %c0_54] : memref<1x32xf32, #tpu.memory_space<vmem>>, vector<1x32xf32>
    %cst_55 = arith.constant dense<0.000000e+00> : vector<24xf32>
    %148 = vector.multi_reduction <add>, %145, %cst_55 [1] : vector<24x32xf32> to vector<24xf32>
    %149 = vector.shape_cast %148 : vector<24xf32> to vector<24x1xf32>
    %cst_56 = arith.constant 3.200000e+01 : f32
    %150 = vector.broadcast %cst_56 : f32 to vector<24x1xf32>
    %151 = arith.divf %149, %150 : vector<24x1xf32>
    %152 = vector.broadcast %151 : vector<24x1xf32> to vector<24x32xf32>
    %153 = arith.subf %145, %152 : vector<24x32xf32>
    %154 = arith.mulf %153, %153 : vector<24x32xf32>
    %cst_57 = arith.constant dense<0.000000e+00> : vector<24xf32>
    %155 = vector.multi_reduction <add>, %154, %cst_57 [1] : vector<24x32xf32> to vector<24xf32>
    %156 = vector.shape_cast %155 : vector<24xf32> to vector<24x1xf32>
    %cst_58 = arith.constant 3.200000e+01 : f32
    %157 = vector.broadcast %cst_58 : f32 to vector<24x1xf32>
    %158 = arith.divf %156, %157 : vector<24x1xf32>
    %159 = vector.broadcast %151 : vector<24x1xf32> to vector<24x32xf32>
    %160 = arith.subf %145, %159 : vector<24x32xf32>
    %cst_59 = arith.constant 9.99999997E-7 : f32
    %161 = vector.broadcast %cst_59 : f32 to vector<24x1xf32>
    %162 = arith.addf %158, %161 : vector<24x1xf32>
    %163 = math.rsqrt %162 : vector<24x1xf32>
    %164 = vector.broadcast %163 : vector<24x1xf32> to vector<24x32xf32>
    %165 = arith.mulf %160, %164 : vector<24x32xf32>
    %166 = vector.broadcast %146 : vector<1x32xf32> to vector<24x32xf32>
    %167 = arith.mulf %165, %166 : vector<24x32xf32>
    %168 = vector.broadcast %147 : vector<1x32xf32> to vector<24x32xf32>
    %169 = arith.addf %167, %168 : vector<24x32xf32>
    %170 = arith.truncf %169 : vector<24x32xf32> to vector<24x32xbf16>
    %c0_60 = arith.constant 0 : index
    %c0_61 = arith.constant 0 : index
    %171 = vector.load %arg13[%c0_60, %c0_61] : memref<32x64xbf16, #tpu.memory_space<vmem>>, vector<32x64xbf16>
    %cst_62 = arith.constant dense<0.000000e+00> : vector<24x64xf32>
    %172 = tpu.matmul %170, %171, %cst_62 {dimension_numbers = #tpu.dot_dimension_numbers<[1], [0], [0], [1], [0, 0, 1, 1], [], []>} : vector<24x32xbf16>, vector<32x64xbf16>, vector<24x64xf32> -> vector<24x64xf32>
    %c0_63 = arith.constant 0 : index
    %c0_64 = arith.constant 0 : index
    %173 = vector.load %arg14[%c0_63, %c0_64] : memref<1x64xf32, #tpu.memory_space<vmem>>, vector<1x64xf32>
    %174 = vector.broadcast %173 : vector<1x64xf32> to vector<24x64xf32>
    %175 = arith.addf %172, %174 : vector<24x64xf32>
    %176 = arith.mulf %175, %175 : vector<24x64xf32>
    %177 = arith.mulf %175, %176 : vector<24x64xf32>
    %cst_65 = arith.constant 4.471500e-02 : f32
    %178 = vector.broadcast %cst_65 : f32 to vector<24x64xf32>
    %179 = arith.mulf %178, %177 : vector<24x64xf32>
    %180 = arith.addf %175, %179 : vector<24x64xf32>
    %cst_66 = arith.constant 0.797884583 : f32
    %181 = vector.broadcast %cst_66 : f32 to vector<24x64xf32>
    %182 = arith.mulf %181, %180 : vector<24x64xf32>
    %183 = math.tanh %182 : vector<24x64xf32>
    %cst_67 = arith.constant 1.000000e+00 : f32
    %184 = vector.broadcast %cst_67 : f32 to vector<24x64xf32>
    %185 = arith.addf %184, %183 : vector<24x64xf32>
    %cst_68 = arith.constant 5.000000e-01 : f32
    %186 = vector.broadcast %cst_68 : f32 to vector<24x64xf32>
    %187 = arith.mulf %186, %185 : vector<24x64xf32>
    %188 = arith.mulf %175, %187 : vector<24x64xf32>
    %189 = arith.truncf %188 : vector<24x64xf32> to vector<24x64xbf16>
    %c0_69 = arith.constant 0 : index
    %c0_70 = arith.constant 0 : index
    %190 = vector.load %arg15[%c0_69, %c0_70] : memref<64x32xbf16, #tpu.memory_space<vmem>>, vector<64x32xbf16>
    %cst_71 = arith.constant dense<0.000000e+00> : vector<24x32xf32>
    %191 = tpu.matmul %189, %190, %cst_71 {dimension_numbers = #tpu.dot_dimension_numbers<[1], [0], [0], [1], [0, 0, 1, 1], [], []>} : vector<24x64xbf16>, vector<64x32xbf16>, vector<24x32xf32> -> vector<24x32xf32>
    %c0_72 = arith.constant 0 : index
    %c0_73 = arith.constant 0 : index
    %192 = vector.load %arg16[%c0_72, %c0_73] : memref<1x32xf32, #tpu.memory_space<vmem>>, vector<1x32xf32>
    %193 = vector.broadcast %192 : vector<1x32xf32> to vector<24x32xf32>
    %194 = arith.addf %191, %193 : vector<24x32xf32>
    %195 = arith.addf %145, %194 : vector<24x32xf32>
    %196 = vector.extract_strided_slice %195 {offsets = [0, 0], sizes = [16, 32], strides = [1, 1]} : vector<24x32xf32> to vector<16x32xf32>
    %c0_74 = arith.constant 0 : index
    %c0_75 = arith.constant 0 : index
    %197 = vector.load %arg17[%c0_74, %c0_75] : memref<1x32xf32, #tpu.memory_space<vmem>>, vector<1x32xf32>
    %c0_76 = arith.constant 0 : index
    %c0_77 = arith.constant 0 : index
    %198 = vector.load %arg18[%c0_76, %c0_77] : memref<1x32xf32, #tpu.memory_space<vmem>>, vector<1x32xf32>
    %cst_78 = arith.constant dense<0.000000e+00> : vector<16xf32>
    %199 = vector.multi_reduction <add>, %196, %cst_78 [1] : vector<16x32xf32> to vector<16xf32>
    %200 = vector.shape_cast %199 : vector<16xf32> to vector<16x1xf32>
    %cst_79 = arith.constant 3.200000e+01 : f32
    %201 = vector.broadcast %cst_79 : f32 to vector<16x1xf32>
    %202 = arith.divf %200, %201 : vector<16x1xf32>
    %203 = vector.broadcast %202 : vector<16x1xf32> to vector<16x32xf32>
    %204 = arith.subf %196, %203 : vector<16x32xf32>
    %205 = arith.mulf %204, %204 : vector<16x32xf32>
    %cst_80 = arith.constant dense<0.000000e+00> : vector<16xf32>
    %206 = vector.multi_reduction <add>, %205, %cst_80 [1] : vector<16x32xf32> to vector<16xf32>
    %207 = vector.shape_cast %206 : vector<16xf32> to vector<16x1xf32>
    %cst_81 = arith.constant 3.200000e+01 : f32
    %208 = vector.broadcast %cst_81 : f32 to vector<16x1xf32>
    %209 = arith.divf %207, %208 : vector<16x1xf32>
    %210 = vector.broadcast %202 : vector<16x1xf32> to vector<16x32xf32>
    %211 = arith.subf %196, %210 : vector<16x32xf32>
    %cst_82 = arith.constant 9.99999997E-7 : f32
    %212 = vector.broadcast %cst_82 : f32 to vector<16x1xf32>
    %213 = arith.addf %209, %212 : vector<16x1xf32>
    %214 = math.rsqrt %213 : vector<16x1xf32>
    %215 = vector.broadcast %214 : vector<16x1xf32> to vector<16x32xf32>
    %216 = arith.mulf %211, %215 : vector<16x32xf32>
    %217 = vector.broadcast %197 : vector<1x32xf32> to vector<16x32xf32>
    %218 = arith.mulf %216, %217 : vector<16x32xf32>
    %219 = vector.broadcast %198 : vector<1x32xf32> to vector<16x32xf32>
    %220 = arith.addf %218, %219 : vector<16x32xf32>
    %221 = arith.truncf %220 : vector<16x32xf32> to vector<16x32xbf16>
    %c0_83 = arith.constant 0 : index
    %c0_84 = arith.constant 0 : index
    %222 = vector.load %arg19[%c0_83, %c0_84] : memref<32x128xbf16, #tpu.memory_space<vmem>>, vector<32x128xbf16>
    %cst_85 = arith.constant dense<0.000000e+00> : vector<16x128xf32>
    %223 = tpu.matmul %221, %222, %cst_85 {dimension_numbers = #tpu.dot_dimension_numbers<[1], [0], [0], [1], [0, 0, 1, 1], [], []>} : vector<16x32xbf16>, vector<32x128xbf16>, vector<16x128xf32> -> vector<16x128xf32>
    %c0_86 = arith.constant 0 : index
    %c0_87 = arith.constant 0 : index
    %224 = vector.load %arg20[%c0_86, %c0_87] : memref<1x128xf32, #tpu.memory_space<vmem>>, vector<1x128xf32>
    %225 = vector.broadcast %224 : vector<1x128xf32> to vector<16x128xf32>
    %226 = arith.addf %223, %225 : vector<16x128xf32>
    %c0_88 = arith.constant 0 : index
    %c0_89 = arith.constant 0 : index
    %c0_90 = arith.constant 0 : index
    %227 = vector.load %arg21[%c0_88, %c0_89, %c0_90] : memref<1x16x128xf32, #tpu.memory_space<vmem>>, vector<1x16x128xf32>
    %228 = vector.shape_cast %227 : vector<1x16x128xf32> to vector<16x128xf32>
    %229 = vector.shape_cast %226 : vector<16x128xf32> to vector<1x16x128xf32>
    tpu.vector_store %arg21[%c0_88, %c0_89, %c0_90], %229 {strides = array<i32>} : memref<1x16x128xf32, #tpu.memory_space<vmem>>, vector<1x16x128xf32>,
    return
  }
  func.func @transform_0(%arg0: i32) -> (i32, i32, i32) {
    %c0_i32 = arith.constant 0 : i32
    %c0_i32_0 = arith.constant 0 : i32
    %c0_i32_1 = arith.constant 0 : i32
    return %arg0, %c0_i32, %c0_i32_0 : i32, i32, i32
  }
  func.func @transform_1(%arg0: i32) -> (i32, i32) {
    %c0_i32 = arith.constant 0 : i32
    %c0_i32_0 = arith.constant 0 : i32
    %c0_i32_1 = arith.constant 0 : i32
    return %c0_i32, %c0_i32_0 : i32, i32
  }
  func.func @transform_2(%arg0: i32) -> (i32, i32) {
    %c0_i32 = arith.constant 0 : i32
    %c0_i32_0 = arith.constant 0 : i32
    %c0_i32_1 = arith.constant 0 : i32
    return %c0_i32, %c0_i32_0 : i32, i32
  }
  func.func @transform_3(%arg0: i32) -> (i32, i32) {
    %c0_i32 = arith.constant 0 : i32
    %c0_i32_0 = arith.constant 0 : i32
    %c0_i32_1 = arith.constant 0 : i32
    return %c0_i32, %c0_i32_0 : i32, i32
  }
  func.func @transform_4(%arg0: i32) -> (i32, i32) {
    %c0_i32 = arith.constant 0 : i32
    %c0_i32_0 = arith.constant 0 : i32
    %c0_i32_1 = arith.constant 0 : i32
    return %c0_i32, %c0_i32_0 : i32, i32
  }
  func.func @transform_5(%arg0: i32) -> (i32, i32) {
    %c0_i32 = arith.constant 0 : i32
    %c0_i32_0 = arith.constant 0 : i32
    %c0_i32_1 = arith.constant 0 : i32
    return %c0_i32, %c0_i32_0 : i32, i32
  }
  func.func @transform_6(%arg0: i32) -> (i32, i32) {
    %c0_i32 = arith.constant 0 : i32
    %c0_i32_0 = arith.constant 0 : i32
    %c0_i32_1 = arith.constant 0 : i32
    return %c0_i32, %c0_i32_0 : i32, i32
  }
  func.func @transform_7(%arg0: i32) -> (i32, i32) {
    %c0_i32 = arith.constant 0 : i32
    %c0_i32_0 = arith.constant 0 : i32
    %c0_i32_1 = arith.constant 0 : i32
    return %c0_i32, %c0_i32_0 : i32, i32
  }
  func.func @transform_8(%arg0: i32) -> (i32, i32) {
    %c0_i32 = arith.constant 0 : i32
    %c0_i32_0 = arith.constant 0 : i32
    %c0_i32_1 = arith.constant 0 : i32
    return %c0_i32, %c0_i32_0 : i32, i32
  }
  func.func @transform_9(%arg0: i32) -> (i32, i32) {
    %c0_i32 = arith.constant 0 : i32
    %c0_i32_0 = arith.constant 0 : i32
    %c0_i32_1 = arith.constant 0 : i32
    return %c0_i32, %c0_i32_0 : i32, i32
  }
  func.func @transform_10(%arg0: i32) -> (i32, i32) {
    %c0_i32 = arith.constant 0 : i32
    %c0_i32_0 = arith.constant 0 : i32
    %c0_i32_1 = arith.constant 0 : i32
    return %c0_i32, %c0_i32_0 : i32, i32
  }
  func.func @transform_11(%arg0: i32) -> (i32, i32) {
    %c0_i32 = arith.constant 0 : i32
    %c0_i32_0 = arith.constant 0 : i32
    %c0_i32_1 = arith.constant 0 : i32
    return %c0_i32, %c0_i32_0 : i32, i32
  }
  func.func @transform_12(%arg0: i32) -> (i32, i32) {
    %c0_i32 = arith.constant 0 : i32
    %c0_i32_0 = arith.constant 0 : i32
    %c0_i32_1 = arith.constant 0 : i32
    return %c0_i32, %c0_i32_0 : i32, i32
  }
  func.func @transform_13(%arg0: i32) -> (i32, i32) {
    %c0_i32 = arith.constant 0 : i32
    %c0_i32_0 = arith.constant 0 : i32
    %c0_i32_1 = arith.constant 0 : i32
    return %c0_i32, %c0_i32_0 : i32, i32
  }
  func.func @transform_14(%arg0: i32) -> (i32, i32) {
    %c0_i32 = arith.constant 0 : i32
    %c0_i32_0 = arith.constant 0 : i32
    %c0_i32_1 = arith.constant 0 : i32
    return %c0_i32, %c0_i32_0 : i32, i32
  }
  func.func @transform_15(%arg0: i32) -> (i32, i32) {
    %c0_i32 = arith.constant 0 : i32
    %c0_i32_0 = arith.constant 0 : i32
    %c0_i32_1 = arith.constant 0 : i32
    return %c0_i32, %c0_i32_0 : i32, i32
  }
  func.func @transform_16(%arg0: i32) -> (i32, i32) {
    %c0_i32 = arith.constant 0 : i32
    %c0_i32_0 = arith.constant 0 : i32
    %c0_i32_1 = arith.constant 0 : i32
    return %c0_i32, %c0_i32_0 : i32, i32
  }
  func.func @transform_17(%arg0: i32) -> (i32, i32) {
    %c0_i32 = arith.constant 0 : i32
    %c0_i32_0 = arith.constant 0 : i32
    %c0_i32_1 = arith.constant 0 : i32
    return %c0_i32, %c0_i32_0 : i32, i32
  }
  func.func @transform_18(%arg0: i32) -> (i32, i32) {
    %c0_i32 = arith.constant 0 : i32
    %c0_i32_0 = arith.constant 0 : i32
    %c0_i32_1 = arith.constant 0 : i32
    return %c0_i32, %c0_i32_0 : i32, i32
  }
  func.func @transform_19(%arg0: i32) -> (i32, i32) {
    %c0_i32 = arith.constant 0 : i32
    %c0_i32_0 = arith.constant 0 : i32
    %c0_i32_1 = arith.constant 0 : i32
    return %c0_i32, %c0_i32_0 : i32, i32
  }
  func.func @transform_20(%arg0: i32) -> (i32, i32, i32) {
    %c0_i32 = arith.constant 0 : i32
    %c0_i32_0 = arith.constant 0 : i32
    %c0_i32_1 = arith.constant 0 : i32
    return %arg0, %c0_i32, %c0_i32_0 : i32, i32, i32
  }
}

</mosaic_0001>

<llo_original>
// kernel: encoder_decoder_forward.1
$region0: #{encoder_decoder_forward.1}
  #allocation0 [shape = 'u32[]', space=smem, size = 0x4, offset = 0x4, fixed_abs, tag = 'smem constant byte address 0x4 - core index']
  #allocation1 [shape = 'u32[144,128]{1,0:T(1,128)}', space=vmem, size = 0x12000, scoped, tag = 'internal scratch']
  %s0 = inlined_call_operand.vmem [shape: f32[2,16,192], index: 0, kind: input, shape index: {}]
  %s1 = inlined_call_operand.vmem [shape: f32[24,32], index: 1, kind: input, shape index: {}]
  %s2 = inlined_call_operand.vmem [shape: bf16[192,32], index: 2, kind: input, shape index: {}]
  %s3 = inlined_call_operand.vmem [shape: f32[1,32], index: 3, kind: input, shape index: {}]
  %s4 = inlined_call_operand.vmem [shape: f32[1,32], index: 4, kind: input, shape index: {}]
  %s5 = inlined_call_operand.vmem [shape: f32[1,32], index: 5, kind: input, shape index: {}]
  %s6 = inlined_call_operand.vmem [shape: bf16[32,96], index: 6, kind: input, shape index: {}]
  %s7 = inlined_call_operand.vmem [shape: f32[1,96], index: 7, kind: input, shape index: {}]
  %s8 = inlined_call_operand.vmem [shape: bf16[32,32], index: 8, kind: input, shape index: {}]
  %s9 = inlined_call_operand.vmem [shape: f32[1,32], index: 9, kind: input, shape index: {}]
  %s10 = inlined_call_operand.vmem [shape: f32[1,32], index: 10, kind: input, shape index: {}]
  %s11 = inlined_call_operand.vmem [shape: f32[1,32], index: 11, kind: input, shape index: {}]
  %s12 = inlined_call_operand.vmem [shape: bf16[32,64], index: 12, kind: input, shape index: {}]
  %s13 = inlined_call_operand.vmem [shape: f32[1,64], index: 13, kind: input, shape index: {}]
  %s14 = inlined_call_operand.vmem [shape: bf16[64,32], index: 14, kind: input, shape index: {}]
  %s15 = inlined_call_operand.vmem [shape: f32[1,32], index: 15, kind: input, shape index: {}]
  %s16 = inlined_call_operand.vmem [shape: f32[1,32], index: 16, kind: input, shape index: {}]
  %s17 = inlined_call_operand.vmem [shape: f32[1,32], index: 17, kind: input, shape index: {}]
  %s18 = inlined_call_operand.vmem [shape: bf16[32,128], index: 18, kind: input, shape index: {}]
  %s19 = inlined_call_operand.vmem [shape: f32[1,128], index: 19, kind: input, shape index: {}]
  %s20 = inlined_call_operand.vmem [shape: f32[2,16,128], index: 20, kind: output, shape index: {}]
  %s21 = sld [smem:[#allocation0]]
  $region113: #{encoder_decoder_forward.1} parent=0
    _
  %s23 = ssub.s32 1, %s21
  %s24 = scalar_select 0, %s23, %s21
  loop: start=0, step=1, limit=4
  $region2: #{encoder_decoder_forward.1} parent=0 // loop_pre_header
    _
  $region3: #{encoder_decoder_forward.1} parent=0 // loop_header
    %s26 = sphi 0, %s30
    %p27 = scmp.ge.s32.totalorder %s26, 4
    %s36 = sphi 0, %s38
    %s39 = sphi 0, %s36
    %s40 = sphi 0, %s39
    %s56 = sphi 0, %s40
    %s60 = sphi 0, %s60
    %s62 = sphi 0, %s60
    %s63 = sphi 0, %s62
    %s77 = sphi 0, %s63
    %s81 = sphi 0, %s81
    %s83 = sphi 0, %s81
    %s84 = sphi 0, %s83
    %s98 = sphi 0, %s84
    %s102 = sphi 0, %s102
    %s104 = sphi 0, %s102
    %s105 = sphi 0, %s104
    %s119 = sphi 0, %s105
    %s123 = sphi 0, %s123
    %s125 = sphi 0, %s123
    %s126 = sphi 0, %s125
    %s140 = sphi 0, %s126
    %s144 = sphi 0, %s144
    %s146 = sphi 0, %s144
    %s147 = sphi 0, %s146
    %s161 = sphi 0, %s147
    %s165 = sphi 0, %s165
    %s167 = sphi 0, %s165
    %s168 = sphi 0, %s167
    %s182 = sphi 0, %s168
    %s186 = sphi 0, %s186
    %s188 = sphi 0, %s186
    %s189 = sphi 0, %s188
    %s203 = sphi 0, %s189
    %s207 = sphi 0, %s207
    %s209 = sphi 0, %s207
    %s210 = sphi 0, %s209
    %s224 = sphi 0, %s210
    %s228 = sphi 0, %s228
    %s230 = sphi 0, %s228
    %s231 = sphi 0, %s230
    %s245 = sphi 0, %s231
    %s249 = sphi 0, %s249
    %s251 = sphi 0, %s249
    %s252 = sphi 0, %s251
    %s266 = sphi 0, %s252
    %s270 = sphi 0, %s270
    %s272 = sphi 0, %s270
    %s273 = sphi 0, %s272
    %s287 = sphi 0, %s273
    %s291 = sphi 0, %s291
    %s293 = sphi 0, %s291
    %s294 = sphi 0, %s293
    %s308 = sphi 0, %s294
    %s312 = sphi 0, %s312
    %s314 = sphi 0, %s312
    %s315 = sphi 0, %s314
    %s329 = sphi 0, %s315
    %s333 = sphi 0, %s333
    %s335 = sphi 0, %s333
    %s336 = sphi 0, %s335
    %s350 = sphi 0, %s336
    %s354 = sphi 0, %s354
    %s356 = sphi 0, %s354
    %s357 = sphi 0, %s356
    %s371 = sphi 0, %s357
    %s375 = sphi 0, %s375
    %s377 = sphi 0, %s375
    %s378 = sphi 0, %s377
    %s392 = sphi 0, %s378
    %s396 = sphi 0, %s396
    %s398 = sphi 0, %s396
    %s399 = sphi 0, %s398
    %s413 = sphi 0, %s399
    %s417 = sphi 0, %s417
    %s419 = sphi 0, %s417
    %s420 = sphi 0, %s419
    %s434 = sphi 0, %s420
    %s438 = sphi 0, %s438
    %s440 = sphi 0, %s438
    %s441 = sphi 0, %s440
    %s455 = sphi 0, %s441
    %s461 = sphi 0, %s463
    %s464 = sphi 0, %s461
    %s465 = sphi 0, %s464
    %s481 = sphi 0, %s465
  $region4: #{encoder_decoder_forward.1} parent=0 // loop_header_branch
    %29 = sbr.rel (%p27) target = $region8
  $region5: #{encoder_decoder_forward.1} parent=0 // loop_body
    %s31 = ssub.s32 %s26, 1
    %s32 = ssub.s32 %s26, 2
    %s33 = sadd.s32 %s26, 1
    %s34 = ssub.s32 %s26, %s33
    %p35 = scmp.eq.s32.totalorder %s34, 0
    %s37 = sadd.s32 %s36, 1
    %s38 = scalar_select %p35, %s36, %s37
    %p41 = pneg %p35
    %p42 = scmp.eq.s32.totalorder %s26, 1
    %p43 = por %p41, %p42
    %p44 = scmp.ne.s32.totalorder %s36, %s39
    %p45 = scmp.eq.s32.totalorder %s26, 0
    %p46 = por %p44, %p45
    %p47 = scmp.ne.s32.totalorder %s36, %s39
    %p48 = scmp.eq.s32.totalorder %s31, 1
    %p49 = por %p47, %p48
    %p50 = scmp.ne.s32.totalorder %s39, %s40
    %p51 = scmp.eq.s32.totalorder %s31, 0
    %p52 = por %p50, %p51
    %p53 = scmp.ne.s32.totalorder %s39, %s40
    %p54 = scmp.eq.s32.totalorder %s32, 1
    %p55 = por %p53, %p54
    %p57 = scmp.ne.s32.totalorder %s40, %s56
    %p58 = scmp.eq.s32.totalorder %s32, 0
    %p59 = por %p57, %p58
    %s61 = sadd.s32 %s60, 1
    %p64 = scmp.eq.s32.totalorder %s26, 1
    %p65 = scmp.ne.s32.totalorder %s60, %s62
    %p66 = scmp.eq.s32.totalorder %s26, 0
    %p67 = por %p65, %p66
    %p68 = scmp.ne.s32.totalorder %s60, %s62
    %p69 = scmp.eq.s32.totalorder %s31, 1
    %p70 = por %p68, %p69
    %p71 = scmp.ne.s32.totalorder %s62, %s63
    %p72 = scmp.eq.s32.totalorder %s31, 0
    %p73 = por %p71, %p72
    %p74 = scmp.ne.s32.totalorder %s62, %s63
    %p75 = scmp.eq.s32.totalorder %s32, 1
    %p76 = por %p74, %p75
    %p78 = scmp.ne.s32.totalorder %s63, %s77
    %p79 = scmp.eq.s32.totalorder %s32, 0
    %p80 = por %p78, %p79
    %s82 = sadd.s32 %s81, 1
    %p85 = scmp.eq.s32.totalorder %s26, 1
    %p86 = scmp.ne.s32.totalorder %s81, %s83
    %p87 = scmp.eq.s32.totalorder %s26, 0
    %p88 = por %p86, %p87
    %p89 = scmp.ne.s32.totalorder %s81, %s83
    %p90 = scmp.eq.s32.totalorder %s31, 1
    %p91 = por %p89, %p90
    %p92 = scmp.ne.s32.totalorder %s83, %s84
    %p93 = scmp.eq.s32.totalorder %s31, 0
    %p94 = por %p92, %p93
    %p95 = scmp.ne.s32.totalorder %s83, %s84
    %p96 = scmp.eq.s32.totalorder %s32, 1
    %p97 = por %p95, %p96
    %p99 = scmp.ne.s32.totalorder %s84, %s98
    %p100 = scmp.eq.s32.totalorder %s32, 0
    %p101 = por %p99, %p100
    %s103 = sadd.s32 %s102, 1
    %p106 = scmp.eq.s32.totalorder %s26, 1
    %p107 = scmp.ne.s32.totalorder %s102, %s104
    %p108 = scmp.eq.s32.totalorder %s26, 0
    %p109 = por %p107, %p108
    %p110 = scmp.ne.s32.totalorder %s102, %s104
    %p111 = scmp.eq.s32.totalorder %s31, 1
    %p112 = por %p110, %p111
    %p113 = scmp.ne.s32.totalorder %s104, %s105
    %p114 = scmp.eq.s32.totalorder %s31, 0
    %p115 = por %p113, %p114
    %p116 = scmp.ne.s32.totalorder %s104, %s105
    %p117 = scmp.eq.s32.totalorder %s32, 1
    %p118 = por %p116, %p117
    %p120 = scmp.ne.s32.totalorder %s105, %s119
    %p121 = scmp.eq.s32.totalorder %s32, 0
    %p122 = por %p120, %p121
    %s124 = sadd.s32 %s123, 1
    %p127 = scmp.eq.s32.totalorder %s26, 1
    %p128 = scmp.ne.s32.totalorder %s123, %s125
    %p129 = scmp.eq.s32.totalorder %s26, 0
    %p130 = por %p128, %p129
    %p131 = scmp.ne.s32.totalorder %s123, %s125
    %p132 = scmp.eq.s32.totalorder %s31, 1
    %p133 = por %p131, %p132
    %p134 = scmp.ne.s32.totalorder %s125, %s126
    %p135 = scmp.eq.s32.totalorder %s31, 0
    %p136 = por %p134, %p135
    %p137 = scmp.ne.s32.totalorder %s125, %s126
    %p138 = scmp.eq.s32.totalorder %s32, 1
    %p139 = por %p137, %p138
    %p141 = scmp.ne.s32.totalorder %s126, %s140
    %p142 = scmp.eq.s32.totalorder %s32, 0
    %p143 = por %p141, %p142
    %s145 = sadd.s32 %s144, 1
    %p148 = scmp.eq.s32.totalorder %s26, 1
    %p149 = scmp.ne.s32.totalorder %s144, %s146
    %p150 = scmp.eq.s32.totalorder %s26, 0
    %p151 = por %p149, %p150
    %p152 = scmp.ne.s32.totalorder %s144, %s146
    %p153 = scmp.eq.s32.totalorder %s31, 1
    %p154 = por %p152, %p153
    %p155 = scmp.ne.s32.totalorder %s146, %s147
    %p156 = scmp.eq.s32.totalorder %s31, 0
    %p157 = por %p155, %p156
    %p158 = scmp.ne.s32.totalorder %s146, %s147
    %p159 = scmp.eq.s32.totalorder %s32, 1
    %p160 = por %p158, %p159
    %p162 = scmp.ne.s32.totalorder %s147, %s161
    %p163 = scmp.eq.s32.totalorder %s32, 0
    %p164 = por %p162, %p163
    %s166 = sadd.s32 %s165, 1
    %p169 = scmp.eq.s32.totalorder %s26, 1
    %p170 = scmp.ne.s32.totalorder %s165, %s167
    %p171 = scmp.eq.s32.totalorder %s26, 0
    %p172 = por %p170, %p171
    %p173 = scmp.ne.s32.totalorder %s165, %s167
    %p174 = scmp.eq.s32.totalorder %s31, 1
    %p175 = por %p173, %p174
    %p176 = scmp.ne.s32.totalorder %s167, %s168
    %p177 = scmp.eq.s32.totalorder %s31, 0
    %p178 = por %p176, %p177
    %p179 = scmp.ne.s32.totalorder %s167, %s168
    %p180 = scmp.eq.s32.totalorder %s32, 1
    %p181 = por %p179, %p180
    %p183 = scmp.ne.s32.totalorder %s168, %s182
    %p184 = scmp.eq.s32.totalorder %s32, 0
    %p185 = por %p183, %p184
    %s187 = sadd.s32 %s186, 1
    %p190 = scmp.eq.s32.totalorder %s26, 1
    %p191 = scmp.ne.s32.totalorder %s186, %s188
    %p192 = scmp.eq.s32.totalorder %s26, 0
    %p193 = por %p191, %p192
    %p194 = scmp.ne.s32.totalorder %s186, %s188
    %p195 = scmp.eq.s32.totalorder %s31, 1
    %p196 = por %p194, %p195
    %p197 = scmp.ne.s32.totalorder %s188, %s189
    %p198 = scmp.eq.s32.totalorder %s31, 0
    %p199 = por %p197, %p198
    %p200 = scmp.ne.s32.totalorder %s188, %s189
    %p201 = scmp.eq.s32.totalorder %s32, 1
    %p202 = por %p200, %p201
    %p204 = scmp.ne.s32.totalorder %s189, %s203
    %p205 = scmp.eq.s32.totalorder %s32, 0
    %p206 = por %p204, %p205
    %s208 = sadd.s32 %s207, 1
    %p211 = scmp.eq.s32.totalorder %s26, 1
    %p212 = scmp.ne.s32.totalorder %s207, %s209
    %p213 = scmp.eq.s32.totalorder %s26, 0
    %p214 = por %p212, %p213
    %p215 = scmp.ne.s32.totalorder %s207, %s209
    %p216 = scmp.eq.s32.totalorder %s31, 1
    %p217 = por %p215, %p216
    %p218 = scmp.ne.s32.totalorder %s209, %s210
    %p219 = scmp.eq.s32.totalorder %s31, 0
    %p220 = por %p218, %p219
    %p221 = scmp.ne.s32.totalorder %s209, %s210
    %p222 = scmp.eq.s32.totalorder %s32, 1
    %p223 = por %p221, %p222
    %p225 = scmp.ne.s32.totalorder %s210, %s224
    %p226 = scmp.eq.s32.totalorder %s32, 0
    %p227 = por %p225, %p226
    %s229 = sadd.s32 %s228, 1
    %p232 = scmp.eq.s32.totalorder %s26, 1
    %p233 = scmp.ne.s32.totalorder %s228, %s230
    %p234 = scmp.eq.s32.totalorder %s26, 0
    %p235 = por %p233, %p234
    %p236 = scmp.ne.s32.totalorder %s228, %s230
    %p237 = scmp.eq.s32.totalorder %s31, 1
    %p238 = por %p236, %p237
    %p239 = scmp.ne.s32.totalorder %s230, %s231
    %p240 = scmp.eq.s32.totalorder %s31, 0
    %p241 = por %p239, %p240
    %p242 = scmp.ne.s32.totalorder %s230, %s231
    %p243 = scmp.eq.s32.totalorder %s32, 1
    %p244 = por %p242, %p243
    %p246 = scmp.ne.s32.totalorder %s231, %s245
    %p247 = scmp.eq.s32.totalorder %s32, 0
    %p248 = por %p246, %p247
    %s250 = sadd.s32 %s249, 1
    %p253 = scmp.eq.s32.totalorder %s26, 1
    %p254 = scmp.ne.s32.totalorder %s249, %s251
    %p255 = scmp.eq.s32.totalorder %s26, 0
    %p256 = por %p254, %p255
    %p257 = scmp.ne.s32.totalorder %s249, %s251
    %p258 = scmp.eq.s32.totalorder %s31, 1
    %p259 = por %p257, %p258
    %p260 = scmp.ne.s32.totalorder %s251, %s252
    %p261 = scmp.eq.s32.totalorder %s31, 0
    %p262 = por %p260, %p261
    %p263 = scmp.ne.s32.totalorder %s251, %s252
    %p264 = scmp.eq.s32.totalorder %s32, 1
    %p265 = por %p263, %p264
    %p267 = scmp.ne.s32.totalorder %s252, %s266
    %p268 = scmp.eq.s32.totalorder %s32, 0
    %p269 = por %p267, %p268
    %s271 = sadd.s32 %s270, 1
    %p274 = scmp.eq.s32.totalorder %s26, 1
    %p275 = scmp.ne.s32.totalorder %s270, %s272
    %p276 = scmp.eq.s32.totalorder %s26, 0
    %p277 = por %p275, %p276
    %p278 = scmp.ne.s32.totalorder %s270, %s272
    %p279 = scmp.eq.s32.totalorder %s31, 1
    %p280 = por %p278, %p279
    %p281 = scmp.ne.s32.totalorder %s272, %s273
    %p282 = scmp.eq.s32.totalorder %s31, 0
    %p283 = por %p281, %p282
    %p284 = scmp.ne.s32.totalorder %s272, %s273
    %p285 = scmp.eq.s32.totalorder %s32, 1
    %p286 = por %p284, %p285
    %p288 = scmp.ne.s32.totalorder %s273, %s287
    %p289 = scmp.eq.s32.totalorder %s32, 0
    %p290 = por %p288, %p289
    %s292 = sadd.s32 %s291, 1
    %p295 = scmp.eq.s32.totalorder %s26, 1
    %p296 = scmp.ne.s32.totalorder %s291, %s293
    %p297 = scmp.eq.s32.totalorder %s26, 0
    %p298 = por %p296, %p297
    %p299 = scmp.ne.s32.totalorder %s291, %s293
    %p300 = scmp.eq.s32.totalorder %s31, 1
    %p301 = por %p299, %p300
    %p302 = scmp.ne.s32.totalorder %s293, %s294
    %p303 = scmp.eq.s32.totalorder %s31, 0
    %p304 = por %p302, %p303
    %p305 = scmp.ne.s32.totalorder %s293, %s294
    %p306 = scmp.eq.s32.totalorder %s32, 1
    %p307 = por %p305, %p306
    %p309 = scmp.ne.s32.totalorder %s294, %s308
    %p310 = scmp.eq.s32.totalorder %s32, 0
    %p311 = por %p309, %p310
    %s313 = sadd.s32 %s312, 1
    %p316 = scmp.eq.s32.totalorder %s26, 1
    %p317 = scmp.ne.s32.totalorder %s312, %s314
    %p318 = scmp.eq.s32.totalorder %s26, 0
    %p319 = por %p317, %p318
    %p320 = scmp.ne.s32.totalorder %s312, %s314
    %p321 = scmp.eq.s32.totalorder %s31, 1
    %p322 = por %p320, %p321
    %p323 = scmp.ne.s32.totalorder %s314, %s315
    %p324 = scmp.eq.s32.totalorder %s31, 0
    %p325 = por %p323, %p324
    %p326 = scmp.ne.s32.totalorder %s314, %s315
    %p327 = scmp.eq.s32.totalorder %s32, 1
    %p328 = por %p326, %p327
    %p330 = scmp.ne.s32.totalorder %s315, %s329
    %p331 = scmp.eq.s32.totalorder %s32, 0
    %p332 = por %p330, %p331
    %s334 = sadd.s32 %s333, 1
    %p337 = scmp.eq.s32.totalorder %s26, 1
    %p338 = scmp.ne.s32.totalorder %s333, %s335
    %p339 = scmp.eq.s32.totalorder %s26, 0
    %p340 = por %p338, %p339
    %p341 = scmp.ne.s32.totalorder %s333, %s335
    %p342 = scmp.eq.s32.totalorder %s31, 1
    %p343 = por %p341, %p342
    %p344 = scmp.ne.s32.totalorder %s335, %s336
    %p345 = scmp.eq.s32.totalorder %s31, 0
    %p346 = por %p344, %p345
    %p347 = scmp.ne.s32.totalorder %s335, %s336
    %p348 = scmp.eq.s32.totalorder %s32, 1
    %p349 = por %p347, %p348
    %p351 = scmp.ne.s32.totalorder %s336, %s350
    %p352 = scmp.eq.s32.totalorder %s32, 0
    %p353 = por %p351, %p352
    %s355 = sadd.s32 %s354, 1
    %p358 = scmp.eq.s32.totalorder %s26, 1
    %p359 = scmp.ne.s32.totalorder %s354, %s356
    %p360 = scmp.eq.s32.totalorder %s26, 0
    %p361 = por %p359, %p360
    %p362 = scmp.ne.s32.totalorder %s354, %s356
    %p363 = scmp.eq.s32.totalorder %s31, 1
    %p364 = por %p362, %p363
    %p365 = scmp.ne.s32.totalorder %s356, %s357
    %p366 = scmp.eq.s32.totalorder %s31, 0
    %p367 = por %p365, %p366
    %p368 = scmp.ne.s32.totalorder %s356, %s357
    %p369 = scmp.eq.s32.totalorder %s32, 1
    %p370 = por %p368, %p369
    %p372 = scmp.ne.s32.totalorder %s357, %s371
    %p373 = scmp.eq.s32.totalorder %s32, 0
    %p374 = por %p372, %p373
    %s376 = sadd.s32 %s375, 1
    %p379 = scmp.eq.s32.totalorder %s26, 1
    %p380 = scmp.ne.s32.totalorder %s375, %s377
    %p381 = scmp.eq.s32.totalorder %s26, 0
    %p382 = por %p380, %p381
    %p383 = scmp.ne.s32.totalorder %s375, %s377
    %p384 = scmp.eq.s32.totalorder %s31, 1
    %p385 = por %p383, %p384
    %p386 = scmp.ne.s32.totalorder %s377, %s378
    %p387 = scmp.eq.s32.totalorder %s31, 0
    %p388 = por %p386, %p387
    %p389 = scmp.ne.s32.totalorder %s377, %s378
    %p390 = scmp.eq.s32.totalorder %s32, 1
    %p391 = por %p389, %p390
    %p393 = scmp.ne.s32.totalorder %s378, %s392
    %p394 = scmp.eq.s32.totalorder %s32, 0
    %p395 = por %p393, %p394
    %s397 = sadd.s32 %s396, 1
    %p400 = scmp.eq.s32.totalorder %s26, 1
    %p401 = scmp.ne.s32.totalorder %s396, %s398
    %p402 = scmp.eq.s32.totalorder %s26, 0
    %p403 = por %p401, %p402
    %p404 = scmp.ne.s32.totalorder %s396, %s398
    %p405 = scmp.eq.s32.totalorder %s31, 1
    %p406 = por %p404, %p405
    %p407 = scmp.ne.s32.totalorder %s398, %s399
    %p408 = scmp.eq.s32.totalorder %s31, 0
    %p409 = por %p407, %p408
    %p410 = scmp.ne.s32.totalorder %s398, %s399
    %p411 = scmp.eq.s32.totalorder %s32, 1
    %p412 = por %p410, %p411
    %p414 = scmp.ne.s32.totalorder %s399, %s413
    %p415 = scmp.eq.s32.totalorder %s32, 0
    %p416 = por %p414, %p415
    %s418 = sadd.s32 %s417, 1
    %p421 = scmp.eq.s32.totalorder %s26, 1
    %p422 = scmp.ne.s32.totalorder %s417, %s419
    %p423 = scmp.eq.s32.totalorder %s26, 0
    %p424 = por %p422, %p423
    %p425 = scmp.ne.s32.totalorder %s417, %s419
    %p426 = scmp.eq.s32.totalorder %s31, 1
    %p427 = por %p425, %p426
    %p428 = scmp.ne.s32.totalorder %s419, %s420
    %p429 = scmp.eq.s32.totalorder %s31, 0
    %p430 = por %p428, %p429
    %p431 = scmp.ne.s32.totalorder %s419, %s420
    %p432 = scmp.eq.s32.totalorder %s32, 1
    %p433 = por %p431, %p432
    %p435 = scmp.ne.s32.totalorder %s420, %s434
    %p436 = scmp.eq.s32.totalorder %s32, 0
    %p437 = por %p435, %p436
    %s439 = sadd.s32 %s438, 1
    %p442 = scmp.eq.s32.totalorder %s26, 1
    %p443 = scmp.ne.s32.totalorder %s438, %s440
    %p444 = scmp.eq.s32.totalorder %s26, 0
    %p445 = por %p443, %p444
    %p446 = scmp.ne.s32.totalorder %s438, %s440
    %p447 = scmp.eq.s32.totalorder %s31, 1
    %p448 = por %p446, %p447
    %p449 = scmp.ne.s32.totalorder %s440, %s441
    %p450 = scmp.eq.s32.totalorder %s31, 0
    %p451 = por %p449, %p450
    %p452 = scmp.ne.s32.totalorder %s440, %s441
    %p453 = scmp.eq.s32.totalorder %s32, 1
    %p454 = por %p452, %p453
    %p456 = scmp.ne.s32.totalorder %s441, %s455
    %p457 = scmp.eq.s32.totalorder %s32, 0
    %p458 = por %p456, %p457
    %s459 = ssub.s32 %s26, %s33
    %p460 = scmp.eq.s32.totalorder %s459, 0
    %s462 = sadd.s32 %s461, 1
    %s463 = scalar_select %p460, %s461, %s462
    %p466 = pneg %p460
    %p467 = scmp.eq.s32.totalorder %s26, 1
    %p468 = por %p466, %p467
    %p469 = scmp.ne.s32.totalorder %s461, %s464
    %p470 = scmp.eq.s32.totalorder %s26, 0
    %p471 = por %p469, %p470
    %p472 = scmp.ne.s32.totalorder %s461, %s464
    %p473 = scmp.eq.s32.totalorder %s31, 1
    %p474 = por %p472, %p473
    %p475 = scmp.ne.s32.totalorder %s464, %s465
    %p476 = scmp.eq.s32.totalorder %s31, 0
    %p477 = por %p475, %p476
    %p478 = scmp.ne.s32.totalorder %s464, %s465
    %p479 = scmp.eq.s32.totalorder %s32, 1
    %p480 = por %p478, %p479
    %p482 = scmp.ne.s32.totalorder %s465, %s481
    %p483 = scmp.eq.s32.totalorder %s32, 0
    %p484 = por %p482, %p483
    %p485 = scmp.le.s32.totalorder 1, %s26
    %p486 = scmp.lt.s32.totalorder %s26, 3
    %p487 = pnand %p485, %p486
    %p488 = pneg %p487
    // Predicated region
    $region9: #{encoder_decoder_forward.1} parent=5 // pred_check
      _
    $region10: #{encoder_decoder_forward.1} parent=5 // pred_check_branch
      %490 = sbr.rel (%p487) target = $region12
    $region11: #{encoder_decoder_forward.1} parent=5 // pred_region
      %s491 = ssub.s32 %s26, 1
      // Predicated region
      $region13: #{encoder_decoder_forward.1} parent=11 // pred_check
        %p492 = pneg %p73
      $region14: #{encoder_decoder_forward.1} parent=11 // pred_check_branch
        %494 = sbr.rel (%p492) target = $region16
      $region15: #{encoder_decoder_forward.1} parent=11 // pred_region
        _
      $region16: #{encoder_decoder_forward.1} parent=11 // pred_fallthru
        _
      // Predicated region
      $region17: #{encoder_decoder_forward.1} parent=11 // pred_check
        %p495 = pneg %p94
      $region18: #{encoder_decoder_forward.1} parent=11 // pred_check_branch
        %497 = sbr.rel (%p495) target = $region20
      $region19: #{encoder_decoder_forward.1} parent=11 // pred_region
        _
      $region20: #{encoder_decoder_forward.1} parent=11 // pred_fallthru
        _
      // Predicated region
      $region21: #{encoder_decoder_forward.1} parent=11 // pred_check
        %p498 = pneg %p115
      $region22: #{encoder_decoder_forward.1} parent=11 // pred_check_branch
        %500 = sbr.rel (%p498) target = $region24
      $region23: #{encoder_decoder_forward.1} parent=11 // pred_region
        _
      $region24: #{encoder_decoder_forward.1} parent=11 // pred_fallthru
        _
      // Predicated region
      $region25: #{encoder_decoder_forward.1} parent=11 // pred_check
        %p501 = pneg %p136
      $region26: #{encoder_decoder_forward.1} parent=11 // pred_check_branch
        %503 = sbr.rel (%p501) target = $region28
      $region27: #{encoder_decoder_forward.1} parent=11 // pred_region
        _
      $region28: #{encoder_decoder_forward.1} parent=11 // pred_fallthru
        _
      // Predicated region
      $region29: #{encoder_decoder_forward.1} parent=11 // pred_check
        %p504 = pneg %p157
      $region30: #{encoder_decoder_forward.1} parent=11 // pred_check_branch
        %506 = sbr.rel (%p504) target = $region32
      $region31: #{encoder_decoder_forward.1} parent=11 // pred_region
        _
      $region32: #{encoder_decoder_forward.1} parent=11 // pred_fallthru
        _
      // Predicated region
      $region33: #{encoder_decoder_forward.1} parent=11 // pred_check
        %p507 = pneg %p178
      $region34: #{encoder_decoder_forward.1} parent=11 // pred_check_branch
        %509 = sbr.rel (%p507) target = $region36
      $region35: #{encoder_decoder_forward.1} parent=11 // pred_region
        _
      $region36: #{encoder_decoder_forward.1} parent=11 // pred_fallthru
        _
      // Predicated region
      $region37: #{encoder_decoder_forward.1} parent=11 // pred_check
        %p510 = pneg %p199
      $region38: #{encoder_decoder_forward.1} parent=11 // pred_check_branch
        %512 = sbr.rel (%p510) target = $region40
      $region39: #{encoder_decoder_forward.1} parent=11 // pred_region
        _
      $region40: #{encoder_decoder_forward.1} parent=11 // pred_fallthru
        _
      // Predicated region
      $region41: #{encoder_decoder_forward.1} parent=11 // pred_check
        %p513 = pneg %p220
      $region42: #{encoder_decoder_forward.1} parent=11 // pred_check_branch
        %515 = sbr.rel (%p513) target = $region44
      $region43: #{encoder_decoder_forward.1} parent=11 // pred_region
        _
      $region44: #{encoder_decoder_forward.1} parent=11 // pred_fallthru
        _
      // Predicated region
      $region45: #{encoder_decoder_forward.1} parent=11 // pred_check
        %p516 = pneg %p241
      $region46: #{encoder_decoder_forward.1} parent=11 // pred_check_branch
        %518 = sbr.rel (%p516) target = $region48
      $region47: #{encoder_decoder_forward.1} parent=11 // pred_region
        _
      $region48: #{encoder_decoder_forward.1} parent=11 // pred_fallthru
        _
      // Predicated region
      $region49: #{encoder_decoder_forward.1} parent=11 // pred_check
        %p519 = pneg %p262
      $region50: #{encoder_decoder_forward.1} parent=11 // pred_check_branch
        %521 = sbr.rel (%p519) target = $region52
      $region51: #{encoder_decoder_forward.1} parent=11 // pred_region
        _
      $region52: #{encoder_decoder_forward.1} parent=11 // pred_fallthru
        _
      // Predicated region
      $region53: #{encoder_decoder_forward.1} parent=11 // pred_check
        %p522 = pneg %p283
      $region54: #{encoder_decoder_forward.1} parent=11 // pred_check_branch
        %524 = sbr.rel (%p522) target = $region56
      $region55: #{encoder_decoder_forward.1} parent=11 // pred_region
        _
      $region56: #{encoder_decoder_forward.1} parent=11 // pred_fallthru
        _
      // Predicated region
      $region57: #{encoder_decoder_forward.1} parent=11 // pred_check
        %p525 = pneg %p304
      $region58: #{encoder_decoder_forward.1} parent=11 // pred_check_branch
        %527 = sbr.rel (%p525) target = $region60
      $region59: #{encoder_decoder_forward.1} parent=11 // pred_region
        _
      $region60: #{encoder_decoder_forward.1} parent=11 // pred_fallthru
        _
      // Predicated region
      $region61: #{encoder_decoder_forward.1} parent=11 // pred_check
        %p528 = pneg %p325
      $region62: #{encoder_decoder_forward.1} parent=11 // pred_check_branch
        %530 = sbr.rel (%p528) target = $region64
      $region63: #{encoder_decoder_forward.1} parent=11 // pred_region
        _
      $region64: #{encoder_decoder_forward.1} parent=11 // pred_fallthru
        _
      // Predicated region
      $region65: #{encoder_decoder_forward.1} parent=11 // pred_check
        %p531 = pneg %p346
      $region66: #{encoder_decoder_forward.1} parent=11 // pred_check_branch
        %533 = sbr.rel (%p531) target = $region68
      $region67: #{encoder_decoder_forward.1} parent=11 // pred_region
        _
      $region68: #{encoder_decoder_forward.1} parent=11 // pred_fallthru
        _
      // Predicated region
      $region69: #{encoder_decoder_forward.1} parent=11 // pred_check
        %p534 = pneg %p367
      $region70: #{encoder_decoder_forward.1} parent=11 // pred_check_branch
        %536 = sbr.rel (%p534) target = $region72
      $region71: #{encoder_decoder_forward.1} parent=11 // pred_region
        _
      $region72: #{encoder_decoder_forward.1} parent=11 // pred_fallthru
        _
      // Predicated region
      $region73: #{encoder_decoder_forward.1} parent=11 // pred_check
        %p537 = pneg %p388
      $region74: #{encoder_decoder_forward.1} parent=11 // pred_check_branch
        %539 = sbr.rel (%p537) target = $region76
      $region75: #{encoder_decoder_forward.1} parent=11 // pred_region
        _
      $region76: #{encoder_decoder_forward.1} parent=11 // pred_fallthru
        _
      // Predicated region
      $region77: #{encoder_decoder_forward.1} parent=11 // pred_check
        %p540 = pneg %p409
      $region78: #{encoder_decoder_forward.1} parent=11 // pred_check_branch
        %542 = sbr.rel (%p540) target = $region80
      $region79: #{encoder_decoder_forward.1} parent=11 // pred_region
        _
      $region80: #{encoder_decoder_forward.1} parent=11 // pred_fallthru
        _
      // Predicated region
      $region81: #{encoder_decoder_forward.1} parent=11 // pred_check
        %p543 = pneg %p430
      $region82: #{encoder_decoder_forward.1} parent=11 // pred_check_branch
        %545 = sbr.rel (%p543) target = $region84
      $region83: #{encoder_decoder_forward.1} parent=11 // pred_region
        _
      $region84: #{encoder_decoder_forward.1} parent=11 // pred_fallthru
        _
      // Predicated region
      $region85: #{encoder_decoder_forward.1} parent=11 // pred_check
        %p546 = pneg %p451
      $region86: #{encoder_decoder_forward.1} parent=11 // pred_check_branch
        %548 = sbr.rel (%p546) target = $region88
      $region87: #{encoder_decoder_forward.1} parent=11 // pred_region
        _
      $region88: #{encoder_decoder_forward.1} parent=11 // pred_fallthru
        _
    $region12: #{encoder_decoder_forward.1} parent=5 // pred_fallthru
      _
    %p549 = scmp.lt.s32.totalorder %s26, 2
    // Predicated region
    $region89: #{encoder_decoder_forward.1} parent=5 // pred_check
      %p550 = pneg %p549
    $region90: #{encoder_decoder_forward.1} parent=5 // pred_check_branch
      %552 = sbr.rel (%p550) target = $region92
    $region91: #{encoder_decoder_forward.1} parent=5 // pred_region
      // Predicated region
      $region93: #{encoder_decoder_forward.1} parent=91 // pred_check
        %p553 = pneg %p46
      $region94: #{encoder_decoder_forward.1} parent=91 // pred_check_branch
        %555 = sbr.rel (%p553) target = $region96
      $region95: #{encoder_decoder_forward.1} parent=91 // pred_region
        %p556 = scmp.lt.s32.totalorder %s26, 1
        %s557 = scalar_select %p556, %s26, 1
        %s558 = smul.addr %s557, 4
        %s559 = smul.addr %s558, 8
        %s560 = scalar_lea.vmem %s0, %s559
      $region96: #{encoder_decoder_forward.1} parent=91 // pred_fallthru
        _
    $region92: #{encoder_decoder_forward.1} parent=5 // pred_fallthru
      _
    %p561 = scmp.le.s32.totalorder 1, %s26
    %p562 = scmp.lt.s32.totalorder %s26, 3
    %p563 = pnand %p561, %p562
    %p564 = pneg %p563
    // Predicated region
    $region97: #{encoder_decoder_forward.1} parent=5 // pred_check
      _
    $region98: #{encoder_decoder_forward.1} parent=5 // pred_check_branch
      %566 = sbr.rel (%p563) target = $region100
    $region99: #{encoder_decoder_forward.1} parent=5 // pred_region
      %s567 = ssub.s32 %s26, 1
      %p568 = scmp.lt.s32.totalorder %s31, 1
      %s569 = scalar_select %p568, %s31, 1
      %s570 = smul.addr %s569, 4
      %s571 = smul.addr %s570, 8
      %s572 = scalar_lea.vmem %s0, %s571
      %p573 = pneg %p52
      %p574 = pneg %p49
      %p575 = pneg %p73
      %p576 = pneg %p70
      %p577 = pneg %p94
      %p578 = pneg %p91
      %p579 = pneg %p115
      %p580 = pneg %p112
      %p581 = pneg %p136
      %p582 = pneg %p133
      %p583 = pneg %p157
      %p584 = pneg %p154
      %p585 = pneg %p178
      %p586 = pneg %p175
      %p587 = pneg %p199
      %p588 = pneg %p196
      %p589 = pneg %p220
      %p590 = pneg %p217
      %p591 = pneg %p241
      %p592 = pneg %p238
      %p593 = pneg %p262
      %p594 = pneg %p259
      %p595 = pneg %p283
      %p596 = pneg %p280
      %p597 = pneg %p304
      %p598 = pneg %p301
      %p599 = pneg %p325
      %p600 = pneg %p322
      %p601 = pneg %p346
      %p602 = pneg %p343
      %p603 = pneg %p367
      %p604 = pneg %p364
      %p605 = pneg %p388
      %p606 = pneg %p385
      %p607 = pneg %p409
      %p608 = pneg %p406
      %p609 = pneg %p430
      %p610 = pneg %p427
      %p611 = pneg %p451
      %p612 = pneg %p448
      %p613 = pneg %p477
      %p614 = pneg %p474
      %p615 = scmp.lt.s32.totalorder %s31, 1
      %s616 = scalar_select %p615, %s31, 1
      %s617 = smul.addr %s616, 2
      %s618 = smul.addr %s617, 8
      %s619 = scalar_lea.vmem %s20, %s618
      %p620 = scmp.lt.s32.totalorder %s31, 1
      %s621 = scalar_select %p620, %s31, 1
      %s622 = smul.addr %s621, 4
      %s623 = smul.addr %s622, 8
      %s624 = scalar_lea.vmem %s0, %s623
      %p625 = scmp.lt.s32.totalorder %s31, 1
      %s626 = scalar_select %p625, %s31, 1
      %s627 = smul.addr %s626, 2
      %s628 = smul.addr %s627, 8
      %s629 = scalar_lea.vmem %s20, %s628
      %v631 = vld [vmem:[%s624] sm:$0xff]
      %v632 = vld [vmem:[%s624 + $0x8] sm:$0xff]
      %v633 = vld [vmem:[%s624 + $0x10] sm:$0xff]
      %v634 = vld [vmem:[%s624 + $0x18] sm:$0xff]
      %v635 = vpack.c.bf16 %v633, %v631
      %v636 = vpack.c.bf16 %v634, %v632
      %v637 = vld [vmem:[%s2] sm:$0xf]
      %v638 = vld [vmem:[%s2 + $0x4] sm:$0xf]
      %v639 = vld [vmem:[%s2 + $0x8] sm:$0xf]
      %v640 = vld [vmem:[%s2 + $0xc] sm:$0xf]
      %v641 = vld [vmem:[%s2 + $0x10] sm:$0xf]
      %v642 = vld [vmem:[%s2 + $0x14] sm:$0xf]
      %v643 = vld [vmem:[%s2 + $0x18] sm:$0xf]
      %v644 = vld [vmem:[%s2 + $0x1c] sm:$0xf]
      %v645 = vld [vmem:[%s2 + $0x20] sm:$0xf]
      %v646 = vld [vmem:[%s2 + $0x24] sm:$0xf]
      %v647 = vld [vmem:[%s2 + $0x28] sm:$0xf]
      %v648 = vld [vmem:[%s2 + $0x2c] sm:$0xf]
      %v649 = vld [vmem:[%s2 + $0x30] sm:$0xf]
      %v650 = vld [vmem:[%s2 + $0x34] sm:$0xf]
      %v651 = vld [vmem:[%s2 + $0x38] sm:$0xf]
      %v652 = vld [vmem:[%s2 + $0x3c] sm:$0xf]
      %v653 = vld [vmem:[%s2 + $0x40] sm:$0xf]
      %v654 = vld [vmem:[%s2 + $0x44] sm:$0xf]
      %v655 = vld [vmem:[%s2 + $0x48] sm:$0xf]
      %v656 = vld [vmem:[%s2 + $0x4c] sm:$0xf]
      %v657 = vld [vmem:[%s2 + $0x50] sm:$0xf]
      %v658 = vld [vmem:[%s2 + $0x54] sm:$0xf]
      %v659 = vld [vmem:[%s2 + $0x58] sm:$0xf]
      %v660 = vld [vmem:[%s2 + $0x5c] sm:$0xf]
      %v661 = vld [vmem:[%s3] sm:$0x1]
      %v663 = vlaneseq
      %v664 = vshrl.u32 %v663, 7
      %v665 = vsub.s32 0, %v664
      %v666 = vrot.slane %v661, %v665
      %v692 = vunpack.c.l.b16 %v637
      %v693 = vunpack.c.l.b16 %v638
      %v694 = vunpack.c.l.b16 %v639
      %v695 = vunpack.c.l.b16 %v640
      %v696 = vunpack.c.l.b16 %v641
      %v697 = vunpack.c.l.b16 %v642
      %v698 = vunpack.c.l.b16 %v643
      %v699 = vunpack.c.l.b16 %v644
      %v700 = vunpack.c.l.b16 %v645
      %v701 = vunpack.c.l.b16 %v646
      %v702 = vunpack.c.l.b16 %v647
      %v703 = vunpack.c.l.b16 %v648
      %v704 = vunpack.c.l.b16 %v649
      %v705 = vunpack.c.l.b16 %v650
      %v706 = vunpack.c.l.b16 %v651
      %v707 = vunpack.c.l.b16 %v652
      %v708 = vunpack.c.l.b16 %v653
      %v709 = vunpack.c.l.b16 %v654
      %v710 = vunpack.c.l.b16 %v655
      %v711 = vunpack.c.l.b16 %v656
      %v712 = vunpack.c.l.b16 %v657
      %v713 = vunpack.c.l.b16 %v658
      %v714 = vunpack.c.l.b16 %v659
      %v715 = vunpack.c.l.b16 %v660
      %v716 = vpack.c.b16 %v693, %v692
      %v717 = vpack.c.b16 %v695, %v694
      %v718 = vpack.c.b16 %v697, %v696
      %v719 = vpack.c.b16 %v699, %v698
      %v720 = vpack.c.b16 %v701, %v700
      %v721 = vpack.c.b16 %v703, %v702
      %v722 = vpack.c.b16 %v705, %v704
      %v723 = vpack.c.b16 %v707, %v706
      %v724 = vpack.c.b16 %v709, %v708
      %v725 = vpack.c.b16 %v711, %v710
      %v726 = vpack.c.b16 %v713, %v712
      %v727 = vpack.c.b16 %v715, %v714
      %vm740 = vcmask 523264
      %v742 = vsel %vm740, %v636, 0
      %744 = vmatprep.subr.bf16.mxu0 0
      %745 = vmatpush1.bf16.msra.mxu0 %v723
      %746 = vmatprep.subr.bf16.mxu0 0
      %747 = vmatpush1.bf16.msra.mxu0 %v722
      %748 = vmatprep.subr.bf16.mxu0 0
      %749 = vmatpush1.bf16.msra.mxu0 %v721
      %750 = vmatprep.subr.bf16.mxu0 0
      %751 = vmatpush1.bf16.msra.mxu0 %v720
      %752 = vmatprep.subr.bf16.mxu0 0
      %753 = vmatpush1.bf16.msra.mxu0 %v719
      %754 = vmatprep.subr.bf16.mxu0 0
      %755 = vmatpush1.bf16.msra.mxu0 %v718
      %756 = vmatprep.subr.bf16.mxu0 0
      %757 = vmatpush1.bf16.msra.mxu0 %v717
      %758 = vmatprep.subr.bf16.mxu0 0
      %759 = vmatpush1.bf16.msra.mxu0 %v716
      %760 = vmatprep.subr.bf16.mxu0 0
      %761 = vmatpush2.bf16.msra.mxu0 0
      %762 = vmatprep.subr.bf16.mxu0 0
      %763 = vmatpush2.bf16.msra.mxu0 0
      %764 = vmatprep.subr.bf16.mxu0 0
      %765 = vmatpush2.bf16.msra.mxu0 0
      %766 = vmatprep.subr.bf16.mxu0 0
      %767 = vmatpush2.bf16.msra.mxu0 0
      %768 = vmatprep.subr.bf16.mxu0 0
      %769 = vmatpush2.bf16.msra.mxu0 %v727
      %770 = vmatprep.subr.bf16.mxu0 0
      %771 = vmatpush2.bf16.msra.mxu0 %v726
      %772 = vmatprep.subr.bf16.mxu0 0
      %773 = vmatpush2.bf16.msra.mxu0 %v725
      %774 = vmatprep.subr.bf16.mxu0 0
      %775 = vmatpush2.bf16.msra.mxu0 %v724
      %776 = vmatprep.mubr.bf16.mxu0 %v742
      %777 = vmatmul.mubr.bf16.gmra.mxu0 %v635
      %v778 = vpop.f32.mrf.mxu0
      %v779 = vadd.f32 %v666, %v778
      %v780 = vpop.f32.mrf.mxu0
      %v781 = vpop.f32.mrf.mxu0
      %v782 = vadd.f32 %v666, %v781
      %v783 = vpop.f32.mrf.mxu0
      %784 = vdwg.mxu0
      %v785 = vld [vmem:[%s1] sm:$0xff]
      %v786 = vld [vmem:[%s1 + $0x8] sm:$0xff]
      %v787 = vld [vmem:[%s1 + $0x10] sm:$0xff]
      %v788 = vadd.f32 %v785, %v779
      %v789 = vadd.f32 %v786, %v782
      %v790 = vld [vmem:[%s4] sm:$0x1]
      %v791 = vld [vmem:[%s5] sm:$0x1]
      %vm792 = vcmask 261120
      %v793 = vsel %vm792, %v788, 0.0
      %794 = vadd.xlane.f32.xlu0 %v793
      %v795 = vpop.xlane.xlu0 %794
      %v796 = vsel %vm792, %v789, 0.0
      %797 = vadd.xlane.f32.xlu0 %v796
      %v798 = vpop.xlane.xlu0 %797
      %v799 = vsel %vm792, %v787, 0.0
      %800 = vadd.xlane.f32.xlu0 %v799
      %v801 = vpop.xlane.xlu0 %800
      %v802 = vrcp.pop 32.0
      %v803 = vmul.f32 %v795, %v802
      %v804 = vmul.f32 %v798, %v802
      %v805 = vmul.f32 %v801, %v802
      %v806 = vsub.f32 %v788, %v803
      %v807 = vsub.f32 %v789, %v804
      %v808 = vsub.f32 %v787, %v805
      %v809 = vmul.f32 %v806, %v806
      %v810 = vmul.f32 %v807, %v807
      %v811 = vmul.f32 %v808, %v808
      %v812 = vsel %vm792, %v809, 0.0
      %813 = vadd.xlane.f32.xlu0 %v812
      %v814 = vpop.xlane.xlu0 %813
      %v815 = vsel %vm792, %v810, 0.0
      %816 = vadd.xlane.f32.xlu0 %v815
      %v817 = vpop.xlane.xlu0 %816
      %v818 = vsel %vm792, %v811, 0.0
      %819 = vadd.xlane.f32.xlu0 %v818
      %v820 = vpop.xlane.xlu0 %819
      %v821 = vmul.f32 %v814, %v802
      %v822 = vmul.f32 %v817, %v802
      %v823 = vmul.f32 %v820, %v802
      %v824 = vadd.f32 %v821, 1e-06
      %v825 = vadd.f32 %v822, 1e-06
      %v826 = vadd.f32 %v823, 1e-06
      %v827 = vrsqrt.pop %v824
      %v828 = vrsqrt.pop %v825
      %v829 = vrsqrt.pop %v826
      %v830 = vmul.f32 %v806, %v827
      %v831 = vmul.f32 %v807, %v828
      %v832 = vmul.f32 %v808, %v829
      %v834 = vlaneseq
      %v835 = vshrl.u32 %v834, 7
      %v836 = vsub.s32 0, %v835
      %v837 = vrot.slane %v790, %v836
      %v839 = vmul.f32 %v830, %v837
      %v840 = vmul.f32 %v831, %v837
      %v841 = vmul.f32 %v832, %v837
      %v843 = vlaneseq
      %v844 = vshrl.u32 %v843, 7
      %v845 = vsub.s32 0, %v844
      %v846 = vrot.slane %v791, %v845
      %v848 = vadd.f32 %v839, %v846
      %v849 = vadd.f32 %v840, %v846
      %v850 = vadd.f32 %v841, %v846
      %v851 = vpack.c.bf16 %v849, %v848
      %v852 = vpack.c.bf16 %v850, %v850
      %v853 = vld [vmem:[%s6] sm:$0xf]
      %v854 = vld [vmem:[%s6 + $0x4] sm:$0xf]
      %v855 = vld [vmem:[%s6 + $0x8] sm:$0xf]
      %v856 = vld [vmem:[%s6 + $0xc] sm:$0xf]
      %v857 = vld [vmem:[%s7] sm:$0x1]
      %v859 = vlaneseq
      %v860 = vshrl.u32 %v859, 7
      %v861 = vsub.s32 0, %v860
      %v862 = vrot.slane %v857, %v861
      %v868 = vunpack.c.l.b16 %v853
      %v869 = vunpack.c.l.b16 %v854
      %v870 = vunpack.c.l.b16 %v855
      %v871 = vunpack.c.l.b16 %v856
      %v872 = vpack.c.b16 %v869, %v868
      %v873 = vpack.c.b16 %v871, %v870
      %v877 = vsel %vm792, %v851, 0
      %v880 = vsel %vm792, %v852, 0
      %882 = vmatprep.subr.bf16.mxu0 0
      %883 = vmatpush1.bf16.msra.mxu0 0
      %884 = vmatprep.subr.bf16.mxu0 0
      %885 = vmatpush1.bf16.msra.mxu0 0
      %886 = vmatprep.subr.bf16.mxu0 0
      %887 = vmatpush1.bf16.msra.mxu0 0
      %888 = vmatprep.subr.bf16.mxu0 0
      %889 = vmatpush1.bf16.msra.mxu0 0
      %890 = vmatprep.subr.bf16.mxu0 0
      %891 = vmatpush1.bf16.msra.mxu0 0
      %892 = vmatprep.subr.bf16.mxu0 0
      %893 = vmatpush1.bf16.msra.mxu0 0
      %894 = vmatprep.subr.bf16.mxu0 0
      %895 = vmatpush1.bf16.msra.mxu0 %v873
      %896 = vmatprep.subr.bf16.mxu0 0
      %897 = vmatpush1.bf16.msra.mxu0 %v872
      %898 = vmatprep.subr.bf16.mxu0 0
      %899 = vmatpush2.bf16.msra.mxu0 0
      %900 = vmatprep.subr.bf16.mxu0 0
      %901 = vmatpush2.bf16.msra.mxu0 0
      %902 = vmatprep.subr.bf16.mxu0 0
      %903 = vmatpush2.bf16.msra.mxu0 0
      %904 = vmatprep.subr.bf16.mxu0 0
      %905 = vmatpush2.bf16.msra.mxu0 0
      %906 = vmatprep.subr.bf16.mxu0 0
      %907 = vmatpush2.bf16.msra.mxu0 0
      %908 = vmatprep.subr.bf16.mxu0 0
      %909 = vmatpush2.bf16.msra.mxu0 0
      %910 = vmatprep.subr.bf16.mxu0 0
      %911 = vmatpush2.bf16.msra.mxu0 0
      %912 = vmatprep.subr.bf16.mxu0 0
      %913 = vmatpush2.bf16.msra.mxu0 0
      %914 = vmatprep.mubr.bf16.mxu0 0
      %915 = vmatmul.mubr.bf16.gmra.mxu0 %v877
      %v916 = vpop.f32.mrf.mxu0
      %v917 = vadd.f32 %v862, %v916
      %v918 = vpop.f32.mrf.mxu0
      %v919 = vpop.f32.mrf.mxu0
      %v920 = vadd.f32 %v862, %v919
      %v921 = vpop.f32.mrf.mxu0
      %922 = vmatprep.mubr.bf16.mxu0 0
      %923 = vmatmul.mubr.bf16.gmra.mxu0 %v880
      %v924 = vpop.f32.mrf.mxu0
      %v925 = vadd.f32 %v862, %v924
      %v926 = vpop.f32.mrf.mxu0
      %v927 = vpop.f32.mrf.mxu0
      %v928 = vpop.f32.mrf.mxu0
      %929 = vdwg.mxu0
      %v930 = vlaneseq
      %v931 = vand.u32 %v930, 127
      %vm932 = vcmp.lt.s32.totalorder %v931, 17
      %v933 = vpack.c.bf16 %v920, %v917
      %v934 = vpack.c.bf16 %v925, %v925
      %937 = vrot.lane.b32.xlu0 %v933, 96
      %v938 = vpop.permute.xlu0 %937
      %939 = vrot.lane.b32.xlu0 %v934, 96
      %v940 = vpop.permute.xlu0 %939
      %vm941 = vcmask 64512
      %v943 = vsel %vm941, %v933, 0
      %v946 = vsel %vm941, %v934, 0
      %v949 = vsel %vm941, %v938, 0
      %v952 = vsel %vm941, %v940, 0
      %954 = vmatprep.subr.bf16.mxu0 0
      %955 = vmatpush1.bf16.xpose.msra.mxu0 0
      %956 = vmatprep.subr.bf16.mxu0 0
      %957 = vmatpush1.bf16.xpose.msra.mxu0 0
      %958 = vmatprep.subr.bf16.mxu0 0
      %959 = vmatpush1.bf16.xpose.msra.mxu0 0
      %960 = vmatprep.subr.bf16.mxu0 0
      %961 = vmatpush1.bf16.xpose.msra.mxu0 0
      %962 = vmatprep.subr.bf16.mxu0 0
      %963 = vmatpush1.bf16.xpose.msra.mxu0 0
      %964 = vmatprep.subr.bf16.mxu0 0
      %965 = vmatpush1.bf16.xpose.msra.mxu0 0
      %966 = vmatprep.subr.bf16.mxu0 0
      %967 = vmatpush1.bf16.xpose.msra.mxu0 %v952
      %968 = vmatprep.subr.bf16.mxu0 0
      %969 = vmatpush1.bf16.xpose.msra.mxu0 %v949
      %970 = vmatprep.subr.bf16.mxu0 0
      %971 = vmatpush2.bf16.xpose.msra.mxu0 0
      %972 = vmatprep.subr.bf16.mxu0 0
      %973 = vmatpush2.bf16.xpose.msra.mxu0 0
      %974 = vmatprep.subr.bf16.mxu0 0
      %975 = vmatpush2.bf16.xpose.msra.mxu0 0
      %976 = vmatprep.subr.bf16.mxu0 0
      %977 = vmatpush2.bf16.xpose.msra.mxu0 0
      %978 = vmatprep.subr.bf16.mxu0 0
      %979 = vmatpush2.bf16.xpose.msra.mxu0 0
      %980 = vmatprep.subr.bf16.mxu0 0
      %981 = vmatpush2.bf16.xpose.msra.mxu0 0
      %982 = vmatprep.subr.bf16.mxu0 0
      %983 = vmatpush2.bf16.xpose.msra.mxu0 0
      %984 = vmatprep.subr.bf16.mxu0 0
      %985 = vmatpush2.bf16.xpose.msra.mxu0 0
      %986 = vmatprep.mubr.bf16.mxu0 0
      %987 = vmatmul.mubr.bf16.gmra.mxu0 %v943
      %v988 = vpop.f32.mrf.mxu0
      %v989 = vadd.f32 0.0, %v988
      %v990 = vpop.f32.mrf.mxu0
      %v991 = vpop.f32.mrf.mxu0
      %v992 = vadd.f32 0.0, %v991
      %v993 = vpop.f32.mrf.mxu0
      %994 = vmatprep.mubr.bf16.mxu0 0
      %995 = vmatmul.mubr.bf16.gmra.mxu0 %v946
      %v996 = vpop.f32.mrf.mxu0
      %v997 = vadd.f32 0.0, %v996
      %v998 = vpop.f32.mrf.mxu0
      %v999 = vpop.f32.mrf.mxu0
      %v1000 = vpop.f32.mrf.mxu0
      %1001 = vdwg.mxu0
      %v1002 = vmul.f32 %v989, 0.35355338
      %v1003 = vmul.f32 %v992, 0.35355338
      %v1004 = vmul.f32 %v997, 0.35355338
      %v1005 = vsel %vm932, %v1002, -1e+30
      %v1006 = vsel %vm932, %v1003, -1e+30
      %v1007 = vsel %vm932, %v1004, -1e+30
      %vm1008 = vcmask 195584
      %v1009 = vsel %vm1008, %v1005, -inf
      %1010 = vmax.xlane.f32.xlu0 %v1009
      %v1011 = vpop.xlane.xlu0 %1010
      %v1012 = vsel %vm1008, %v1006, -inf
      %1013 = vmax.xlane.f32.xlu0 %v1012
      %v1014 = vpop.xlane.xlu0 %1013
      %v1015 = vsel %vm1008, %v1007, -inf
      %1016 = vmax.xlane.f32.xlu0 %v1015
      %v1017 = vpop.xlane.xlu0 %1016
      %v1018 = vsub.f32 %v1005, %v1011
      %v1019 = vsub.f32 %v1006, %v1014
      %v1020 = vsub.f32 %v1007, %v1017
      %v1021 = vmul.f32 %v1018, 1.442695
      %v1022 = vpow.pop %v1021
      %v1023 = vmul.f32 %v1019, 1.442695
      %v1024 = vpow.pop %v1023
      %v1025 = vmul.f32 %v1020, 1.442695
      %v1026 = vpow.pop %v1025
      %v1027 = vsel %vm1008, %v1022, 0.0
      %1028 = vadd.xlane.f32.xlu0 %v1027
      %v1029 = vpop.xlane.xlu0 %1028
      %v1030 = vsel %vm1008, %v1024, 0.0
      %1031 = vadd.xlane.f32.xlu0 %v1030
      %v1032 = vpop.xlane.xlu0 %1031
      %v1033 = vsel %vm1008, %v1026, 0.0
      %1034 = vadd.xlane.f32.xlu0 %v1033
      %v1035 = vpop.xlane.xlu0 %1034
      %v1036 = vrcp.pop %v1029
      %v1037 = vrcp.pop %v1032
      %v1038 = vrcp.pop %v1035
      %v1039 = vmul.f32 %v1022, %v1036
      %v1040 = vmul.f32 %v1024, %v1037
      %v1041 = vmul.f32 %v1026, %v1038
      %v1042 = vpack.c.bf16 %v1040, %v1039
      %v1043 = vpack.c.bf16 %v1041, %v1041
      %1044 = vrot.lane.b32.xlu0 %v933, 64
      %v1045 = vpop.permute.xlu0 %1044
      %1046 = vrot.lane.b32.xlu0 %v934, 64
      %v1047 = vpop.permute.xlu0 %1046
      %v1050 = vsel %vm1008, %v1042, 0
      %v1053 = vsel %vm1008, %v1043, 0
      %vm1055 = vcmask 1043456
      %v1057 = vsel %vm1055, %v1047, 0
      %1059 = vmatprep.subr.bf16.mxu0 0
      %1060 = vmatpush1.bf16.msra.mxu0 0
      %1061 = vmatprep.subr.bf16.mxu0 0
      %1062 = vmatpush1.bf16.msra.mxu0 0
      %1063 = vmatprep.subr.bf16.mxu0 0
      %1064 = vmatpush1.bf16.msra.mxu0 0
      %1065 = vmatprep.subr.bf16.mxu0 0
      %1066 = vmatpush1.bf16.msra.mxu0 0
      %1067 = vmatprep.subr.bf16.mxu0 0
      %1068 = vmatpush1.bf16.msra.mxu0 0
      %1069 = vmatprep.subr.bf16.mxu0 0
      %1070 = vmatpush1.bf16.msra.mxu0 0
      %1071 = vmatprep.subr.bf16.mxu0 0
      %1072 = vmatpush1.bf16.msra.mxu0 %v1057
      %1073 = vmatprep.subr.bf16.mxu0 0
      %1074 = vmatpush1.bf16.msra.mxu0 %v1045
      %1075 = vmatprep.subr.bf16.mxu0 0
      %1076 = vmatpush2.bf16.msra.mxu0 0
      %1077 = vmatprep.subr.bf16.mxu0 0
      %1078 = vmatpush2.bf16.msra.mxu0 0
      %1079 = vmatprep.subr.bf16.mxu0 0
      %1080 = vmatpush2.bf16.msra.mxu0 0
      %1081 = vmatprep.subr.bf16.mxu0 0
      %1082 = vmatpush2.bf16.msra.mxu0 0
      %1083 = vmatprep.subr.bf16.mxu0 0
      %1084 = vmatpush2.bf16.msra.mxu0 0
      %1085 = vmatprep.subr.bf16.mxu0 0
      %1086 = vmatpush2.bf16.msra.mxu0 0
      %1087 = vmatprep.subr.bf16.mxu0 0
      %1088 = vmatpush2.bf16.msra.mxu0 0
      %1089 = vmatprep.subr.bf16.mxu0 0
      %1090 = vmatpush2.bf16.msra.mxu0 0
      %1091 = vmatprep.mubr.bf16.mxu0 0
      %1092 = vmatmul.mubr.bf16.gmra.mxu0 %v1050
      %v1093 = vpop.f32.mrf.mxu0
      %v1094 = vadd.f32 0.0, %v1093
      %v1095 = vpop.f32.mrf.mxu0
      %v1096 = vpop.f32.mrf.mxu0
      %v1097 = vadd.f32 0.0, %v1096
      %v1098 = vpop.f32.mrf.mxu0
      %1099 = vmatprep.mubr.bf16.mxu0 0
      %1100 = vmatmul.mubr.bf16.gmra.mxu0 %v1053
      %v1101 = vpop.f32.mrf.mxu0
      %v1102 = vadd.f32 0.0, %v1101
      %v1103 = vpop.f32.mrf.mxu0
      %v1104 = vpop.f32.mrf.mxu0
      %v1105 = vpop.f32.mrf.mxu0
      %1106 = vdwg.mxu0
      %1107 = vrot.lane.b32.xlu0 %v933, 120
      %v1108 = vpop.permute.xlu0 %1107
      %1109 = vrot.lane.b32.xlu0 %v934, 120
      %v1110 = vpop.permute.xlu0 %1109
      %1111 = vrot.lane.b32.xlu0 %v933, 88
      %v1112 = vpop.permute.xlu0 %1111
      %1113 = vrot.lane.b32.xlu0 %v934, 88
      %v1114 = vpop.permute.xlu0 %1113
      %v1116 = vsel %vm941, %v1108, 0
      %v1119 = vsel %vm941, %v1110, 0
      %v1122 = vsel %vm941, %v1112, 0
      %v1125 = vsel %vm941, %v1114, 0
      %1127 = vmatprep.subr.bf16.mxu0 0
      %1128 = vmatpush1.bf16.xpose.msra.mxu0 0
      %1129 = vmatprep.subr.bf16.mxu0 0
      %1130 = vmatpush1.bf16.xpose.msra.mxu0 0
      %1131 = vmatprep.subr.bf16.mxu0 0
      %1132 = vmatpush1.bf16.xpose.msra.mxu0 0
      %1133 = vmatprep.subr.bf16.mxu0 0
      %1134 = vmatpush1.bf16.xpose.msra.mxu0 0
      %1135 = vmatprep.subr.bf16.mxu0 0
      %1136 = vmatpush1.bf16.xpose.msra.mxu0 0
      %1137 = vmatprep.subr.bf16.mxu0 0
      %1138 = vmatpush1.bf16.xpose.msra.mxu0 0
      %1139 = vmatprep.subr.bf16.mxu0 0
      %1140 = vmatpush1.bf16.xpose.msra.mxu0 %v1125
      %1141 = vmatprep.subr.bf16.mxu0 0
      %1142 = vmatpush1.bf16.xpose.msra.mxu0 %v1122
      %1143 = vmatprep.subr.bf16.mxu0 0
      %1144 = vmatpush2.bf16.xpose.msra.mxu0 0
      %1145 = vmatprep.subr.bf16.mxu0 0
      %1146 = vmatpush2.bf16.xpose.msra.mxu0 0
      %1147 = vmatprep.subr.bf16.mxu0 0
      %1148 = vmatpush2.bf16.xpose.msra.mxu0 0
      %1149 = vmatprep.subr.bf16.mxu0 0
      %1150 = vmatpush2.bf16.xpose.msra.mxu0 0
      %1151 = vmatprep.subr.bf16.mxu0 0
      %1152 = vmatpush2.bf16.xpose.msra.mxu0 0
      %1153 = vmatprep.subr.bf16.mxu0 0
      %1154 = vmatpush2.bf16.xpose.msra.mxu0 0
      %1155 = vmatprep.subr.bf16.mxu0 0
      %1156 = vmatpush2.bf16.xpose.msra.mxu0 0
      %1157 = vmatprep.subr.bf16.mxu0 0
      %1158 = vmatpush2.bf16.xpose.msra.mxu0 0
      %1159 = vmatprep.mubr.bf16.mxu0 0
      %1160 = vmatmul.mubr.bf16.gmra.mxu0 %v1116
      %v1161 = vpop.f32.mrf.mxu0
      %v1162 = vadd.f32 0.0, %v1161
      %v1163 = vpop.f32.mrf.mxu0
      %v1164 = vpop.f32.mrf.mxu0
      %v1165 = vadd.f32 0.0, %v1164
      %v1166 = vpop.f32.mrf.mxu0
      %1167 = vmatprep.mubr.bf16.mxu0 0
      %1168 = vmatmul.mubr.bf16.gmra.mxu0 %v1119
      %v1169 = vpop.f32.mrf.mxu0
      %v1170 = vadd.f32 0.0, %v1169
      %v1171 = vpop.f32.mrf.mxu0
      %v1172 = vpop.f32.mrf.mxu0
      %v1173 = vpop.f32.mrf.mxu0
      %1174 = vdwg.mxu0
      %v1175 = vmul.f32 %v1162, 0.35355338
      %v1176 = vmul.f32 %v1165, 0.35355338
      %v1177 = vmul.f32 %v1170, 0.35355338
      %v1178 = vsel %vm932, %v1175, -1e+30
      %v1179 = vsel %vm932, %v1176, -1e+30
      %v1180 = vsel %vm932, %v1177, -1e+30
      %v1181 = vsel %vm1008, %v1178, -inf
      %1182 = vmax.xlane.f32.xlu0 %v1181
      %v1183 = vpop.xlane.xlu0 %1182
      %v1184 = vsel %vm1008, %v1179, -inf
      %1185 = vmax.xlane.f32.xlu0 %v1184
      %v1186 = vpop.xlane.xlu0 %1185
      %v1187 = vsel %vm1008, %v1180, -inf
      %1188 = vmax.xlane.f32.xlu0 %v1187
      %v1189 = vpop.xlane.xlu0 %1188
      %v1190 = vsub.f32 %v1178, %v1183
      %v1191 = vsub.f32 %v1179, %v1186
      %v1192 = vsub.f32 %v1180, %v1189
      %v1193 = vmul.f32 %v1190, 1.442695
      %v1194 = vpow.pop %v1193
      %v1195 = vmul.f32 %v1191, 1.442695
      %v1196 = vpow.pop %v1195
      %v1197 = vmul.f32 %v1192, 1.442695
      %v1198 = vpow.pop %v1197
      %v1199 = vsel %vm1008, %v1194, 0.0
      %1200 = vadd.xlane.f32.xlu0 %v1199
      %v1201 = vpop.xlane.xlu0 %1200
      %v1202 = vsel %vm1008, %v1196, 0.0
      %1203 = vadd.xlane.f32.xlu0 %v1202
      %v1204 = vpop.xlane.xlu0 %1203
      %v1205 = vsel %vm1008, %v1198, 0.0
      %1206 = vadd.xlane.f32.xlu0 %v1205
      %v1207 = vpop.xlane.xlu0 %1206
      %v1208 = vrcp.pop %v1201
      %v1209 = vrcp.pop %v1204
      %v1210 = vrcp.pop %v1207
      %v1211 = vmul.f32 %v1194, %v1208
      %v1212 = vmul.f32 %v1196, %v1209
      %v1213 = vmul.f32 %v1198, %v1210
      %v1214 = vpack.c.bf16 %v1212, %v1211
      %v1215 = vpack.c.bf16 %v1213, %v1213
      %1216 = vrot.lane.b32.xlu0 %v933, 56
      %v1217 = vpop.permute.xlu0 %1216
      %1218 = vrot.lane.b32.xlu0 %v934, 56
      %v1219 = vpop.permute.xlu0 %1218
      %v1222 = vsel %vm1008, %v1214, 0
      %v1225 = vsel %vm1008, %v1215, 0
      %v1228 = vsel %vm1055, %v1219, 0
      %1230 = vmatprep.subr.bf16.mxu0 0
      %1231 = vmatpush1.bf16.msra.mxu0 0
      %1232 = vmatprep.subr.bf16.mxu0 0
      %1233 = vmatpush1.bf16.msra.mxu0 0
      %1234 = vmatprep.subr.bf16.mxu0 0
      %1235 = vmatpush1.bf16.msra.mxu0 0
      %1236 = vmatprep.subr.bf16.mxu0 0
      %1237 = vmatpush1.bf16.msra.mxu0 0
      %1238 = vmatprep.subr.bf16.mxu0 0
      %1239 = vmatpush1.bf16.msra.mxu0 0
      %1240 = vmatprep.subr.bf16.mxu0 0
      %1241 = vmatpush1.bf16.msra.mxu0 0
      %1242 = vmatprep.subr.bf16.mxu0 0
      %1243 = vmatpush1.bf16.msra.mxu0 %v1228
      %1244 = vmatprep.subr.bf16.mxu0 0
      %1245 = vmatpush1.bf16.msra.mxu0 %v1217
      %1246 = vmatprep.subr.bf16.mxu0 0
      %1247 = vmatpush2.bf16.msra.mxu0 0
      %1248 = vmatprep.subr.bf16.mxu0 0
      %1249 = vmatpush2.bf16.msra.mxu0 0
      %1250 = vmatprep.subr.bf16.mxu0 0
      %1251 = vmatpush2.bf16.msra.mxu0 0
      %1252 = vmatprep.subr.bf16.mxu0 0
      %1253 = vmatpush2.bf16.msra.mxu0 0
      %1254 = vmatprep.subr.bf16.mxu0 0
      %1255 = vmatpush2.bf16.msra.mxu0 0
      %1256 = vmatprep.subr.bf16.mxu0 0
      %1257 = vmatpush2.bf16.msra.mxu0 0
      %1258 = vmatprep.subr.bf16.mxu0 0
      %1259 = vmatpush2.bf16.msra.mxu0 0
      %1260 = vmatprep.subr.bf16.mxu0 0
      %1261 = vmatpush2.bf16.msra.mxu0 0
      %1262 = vmatprep.mubr.bf16.mxu0 0
      %1263 = vmatmul.mubr.bf16.gmra.mxu0 %v1222
      %v1264 = vpop.f32.mrf.mxu0
      %v1265 = vadd.f32 0.0, %v1264
      %v1266 = vpop.f32.mrf.mxu0
      %v1267 = vpop.f32.mrf.mxu0
      %v1268 = vadd.f32 0.0, %v1267
      %v1269 = vpop.f32.mrf.mxu0
      %1270 = vmatprep.mubr.bf16.mxu0 0
      %1271 = vmatmul.mubr.bf16.gmra.mxu0 %v1225
      %v1272 = vpop.f32.mrf.mxu0
      %v1273 = vadd.f32 0.0, %v1272
      %v1274 = vpop.f32.mrf.mxu0
      %v1275 = vpop.f32.mrf.mxu0
      %v1276 = vpop.f32.mrf.mxu0
      %1277 = vdwg.mxu0
      %1278 = vrot.lane.b32.xlu0 %v933, 112
      %v1279 = vpop.permute.xlu0 %1278
      %1280 = vrot.lane.b32.xlu0 %v934, 112
      %v1281 = vpop.permute.xlu0 %1280
      %1282 = vrot.lane.b32.xlu0 %v933, 80
      %v1283 = vpop.permute.xlu0 %1282
      %1284 = vrot.lane.b32.xlu0 %v934, 80
      %v1285 = vpop.permute.xlu0 %1284
      %v1287 = vsel %vm941, %v1279, 0
      %v1290 = vsel %vm941, %v1281, 0
      %v1293 = vsel %vm941, %v1283, 0
      %v1296 = vsel %vm941, %v1285, 0
      %1298 = vmatprep.subr.bf16.mxu0 0
      %1299 = vmatpush1.bf16.xpose.msra.mxu0 0
      %1300 = vmatprep.subr.bf16.mxu0 0
      %1301 = vmatpush1.bf16.xpose.msra.mxu0 0
      %1302 = vmatprep.subr.bf16.mxu0 0
      %1303 = vmatpush1.bf16.xpose.msra.mxu0 0
      %1304 = vmatprep.subr.bf16.mxu0 0
      %1305 = vmatpush1.bf16.xpose.msra.mxu0 0
      %1306 = vmatprep.subr.bf16.mxu0 0
      %1307 = vmatpush1.bf16.xpose.msra.mxu0 0
      %1308 = vmatprep.subr.bf16.mxu0 0
      %1309 = vmatpush1.bf16.xpose.msra.mxu0 0
      %1310 = vmatprep.subr.bf16.mxu0 0
      %1311 = vmatpush1.bf16.xpose.msra.mxu0 %v1296
      %1312 = vmatprep.subr.bf16.mxu0 0
      %1313 = vmatpush1.bf16.xpose.msra.mxu0 %v1293
      %1314 = vmatprep.subr.bf16.mxu0 0
      %1315 = vmatpush2.bf16.xpose.msra.mxu0 0
      %1316 = vmatprep.subr.bf16.mxu0 0
      %1317 = vmatpush2.bf16.xpose.msra.mxu0 0
      %1318 = vmatprep.subr.bf16.mxu0 0
      %1319 = vmatpush2.bf16.xpose.msra.mxu0 0
      %1320 = vmatprep.subr.bf16.mxu0 0
      %1321 = vmatpush2.bf16.xpose.msra.mxu0 0
      %1322 = vmatprep.subr.bf16.mxu0 0
      %1323 = vmatpush2.bf16.xpose.msra.mxu0 0
      %1324 = vmatprep.subr.bf16.mxu0 0
      %1325 = vmatpush2.bf16.xpose.msra.mxu0 0
      %1326 = vmatprep.subr.bf16.mxu0 0
      %1327 = vmatpush2.bf16.xpose.msra.mxu0 0
      %1328 = vmatprep.subr.bf16.mxu0 0
      %1329 = vmatpush2.bf16.xpose.msra.mxu0 0
      %1330 = vmatprep.mubr.bf16.mxu0 0
      %1331 = vmatmul.mubr.bf16.gmra.mxu0 %v1287
      %v1332 = vpop.f32.mrf.mxu0
      %v1333 = vadd.f32 0.0, %v1332
      %v1334 = vpop.f32.mrf.mxu0
      %v1335 = vpop.f32.mrf.mxu0
      %v1336 = vadd.f32 0.0, %v1335
      %v1337 = vpop.f32.mrf.mxu0
      %1338 = vmatprep.mubr.bf16.mxu0 0
      %1339 = vmatmul.mubr.bf16.gmra.mxu0 %v1290
      %v1340 = vpop.f32.mrf.mxu0
      %v1341 = vadd.f32 0.0, %v1340
      %v1342 = vpop.f32.mrf.mxu0
      %v1343 = vpop.f32.mrf.mxu0
      %v1344 = vpop.f32.mrf.mxu0
      %1345 = vdwg.mxu0
      %v1346 = vmul.f32 %v1333, 0.35355338
      %v1347 = vmul.f32 %v1336, 0.35355338
      %v1348 = vmul.f32 %v1341, 0.35355338
      %v1349 = vsel %vm932, %v1346, -1e+30
      %v1350 = vsel %vm932, %v1347, -1e+30
      %v1351 = vsel %vm932, %v1348, -1e+30
      %v1352 = vsel %vm1008, %v1349, -inf
      %1353 = vmax.xlane.f32.xlu0 %v1352
      %v1354 = vpop.xlane.xlu0 %1353
      %v1355 = vsel %vm1008, %v1350, -inf
      %1356 = vmax.xlane.f32.xlu0 %v1355
      %v1357 = vpop.xlane.xlu0 %1356
      %v1358 = vsel %vm1008, %v1351, -inf
      %1359 = vmax.xlane.f32.xlu0 %v1358
      %v1360 = vpop.xlane.xlu0 %1359
      %v1361 = vsub.f32 %v1349, %v1354
      %v1362 = vsub.f32 %v1350, %v1357
      %v1363 = vsub.f32 %v1351, %v1360
      %v1364 = vmul.f32 %v1361, 1.442695
      %v1365 = vpow.pop %v1364
      %v1366 = vmul.f32 %v1362, 1.442695
      %v1367 = vpow.pop %v1366
      %v1368 = vmul.f32 %v1363, 1.442695
      %v1369 = vpow.pop %v1368
      %v1370 = vsel %vm1008, %v1365, 0.0
      %1371 = vadd.xlane.f32.xlu0 %v1370
      %v1372 = vpop.xlane.xlu0 %1371
      %v1373 = vsel %vm1008, %v1367, 0.0
      %1374 = vadd.xlane.f32.xlu0 %v1373
      %v1375 = vpop.xlane.xlu0 %1374
      %v1376 = vsel %vm1008, %v1369, 0.0
      %1377 = vadd.xlane.f32.xlu0 %v1376
      %v1378 = vpop.xlane.xlu0 %1377
      %v1379 = vrcp.pop %v1372
      %v1380 = vrcp.pop %v1375
      %v1381 = vrcp.pop %v1378
      %v1382 = vmul.f32 %v1365, %v1379
      %v1383 = vmul.f32 %v1367, %v1380
      %v1384 = vmul.f32 %v1369, %v1381
      %v1385 = vpack.c.bf16 %v1383, %v1382
      %v1386 = vpack.c.bf16 %v1384, %v1384
      %1387 = vrot.lane.b32.xlu0 %v933, 48
      %v1388 = vpop.permute.xlu0 %1387
      %1389 = vrot.lane.b32.xlu0 %v934, 48
      %v1390 = vpop.permute.xlu0 %1389
      %v1393 = vsel %vm1008, %v1385, 0
      %v1396 = vsel %vm1008, %v1386, 0
      %v1399 = vsel %vm1055, %v1390, 0
      %1401 = vmatprep.subr.bf16.mxu0 0
      %1402 = vmatpush1.bf16.msra.mxu0 0
      %1403 = vmatprep.subr.bf16.mxu0 0
      %1404 = vmatpush1.bf16.msra.mxu0 0
      %1405 = vmatprep.subr.bf16.mxu0 0
      %1406 = vmatpush1.bf16.msra.mxu0 0
      %1407 = vmatprep.subr.bf16.mxu0 0
      %1408 = vmatpush1.bf16.msra.mxu0 0
      %1409 = vmatprep.subr.bf16.mxu0 0
      %1410 = vmatpush1.bf16.msra.mxu0 0
      %1411 = vmatprep.subr.bf16.mxu0 0
      %1412 = vmatpush1.bf16.msra.mxu0 0
      %1413 = vmatprep.subr.bf16.mxu0 0
      %1414 = vmatpush1.bf16.msra.mxu0 %v1399
      %1415 = vmatprep.subr.bf16.mxu0 0
      %1416 = vmatpush1.bf16.msra.mxu0 %v1388
      %1417 = vmatprep.subr.bf16.mxu0 0
      %1418 = vmatpush2.bf16.msra.mxu0 0
      %1419 = vmatprep.subr.bf16.mxu0 0
      %1420 = vmatpush2.bf16.msra.mxu0 0
      %1421 = vmatprep.subr.bf16.mxu0 0
      %1422 = vmatpush2.bf16.msra.mxu0 0
      %1423 = vmatprep.subr.bf16.mxu0 0
      %1424 = vmatpush2.bf16.msra.mxu0 0
      %1425 = vmatprep.subr.bf16.mxu0 0
      %1426 = vmatpush2.bf16.msra.mxu0 0
      %1427 = vmatprep.subr.bf16.mxu0 0
      %1428 = vmatpush2.bf16.msra.mxu0 0
      %1429 = vmatprep.subr.bf16.mxu0 0
      %1430 = vmatpush2.bf16.msra.mxu0 0
      %1431 = vmatprep.subr.bf16.mxu0 0
      %1432 = vmatpush2.bf16.msra.mxu0 0
      %1433 = vmatprep.mubr.bf16.mxu0 0
      %1434 = vmatmul.mubr.bf16.gmra.mxu0 %v1393
      %v1435 = vpop.f32.mrf.mxu0
      %v1436 = vadd.f32 0.0, %v1435
      %v1437 = vpop.f32.mrf.mxu0
      %v1438 = vpop.f32.mrf.mxu0
      %v1439 = vadd.f32 0.0, %v1438
      %v1440 = vpop.f32.mrf.mxu0
      %1441 = vmatprep.mubr.bf16.mxu0 0
      %1442 = vmatmul.mubr.bf16.gmra.mxu0 %v1396
      %v1443 = vpop.f32.mrf.mxu0
      %v1444 = vadd.f32 0.0, %v1443
      %v1445 = vpop.f32.mrf.mxu0
      %v1446 = vpop.f32.mrf.mxu0
      %v1447 = vpop.f32.mrf.mxu0
      %1448 = vdwg.mxu0
      %1449 = vrot.lane.b32.xlu0 %v933, 104
      %v1450 = vpop.permute.xlu0 %1449
      %1451 = vrot.lane.b32.xlu0 %v934, 104
      %v1452 = vpop.permute.xlu0 %1451
      %1453 = vrot.lane.b32.xlu0 %v933, 72
      %v1454 = vpop.permute.xlu0 %1453
      %1455 = vrot.lane.b32.xlu0 %v934, 72
      %v1456 = vpop.permute.xlu0 %1455
      %v1458 = vsel %vm941, %v1450, 0
      %v1461 = vsel %vm941, %v1452, 0
      %v1464 = vsel %vm941, %v1454, 0
      %v1467 = vsel %vm941, %v1456, 0
      %1469 = vmatprep.subr.bf16.mxu0 0
      %1470 = vmatpush1.bf16.xpose.msra.mxu0 0
      %1471 = vmatprep.subr.bf16.mxu0 0
      %1472 = vmatpush1.bf16.xpose.msra.mxu0 0
      %1473 = vmatprep.subr.bf16.mxu0 0
      %1474 = vmatpush1.bf16.xpose.msra.mxu0 0
      %1475 = vmatprep.subr.bf16.mxu0 0
      %1476 = vmatpush1.bf16.xpose.msra.mxu0 0
      %1477 = vmatprep.subr.bf16.mxu0 0
      %1478 = vmatpush1.bf16.xpose.msra.mxu0 0
      %1479 = vmatprep.subr.bf16.mxu0 0
      %1480 = vmatpush1.bf16.xpose.msra.mxu0 0
      %1481 = vmatprep.subr.bf16.mxu0 0
      %1482 = vmatpush1.bf16.xpose.msra.mxu0 %v1467
      %1483 = vmatprep.subr.bf16.mxu0 0
      %1484 = vmatpush1.bf16.xpose.msra.mxu0 %v1464
      %1485 = vmatprep.subr.bf16.mxu0 0
      %1486 = vmatpush2.bf16.xpose.msra.mxu0 0
      %1487 = vmatprep.subr.bf16.mxu0 0
      %1488 = vmatpush2.bf16.xpose.msra.mxu0 0
      %1489 = vmatprep.subr.bf16.mxu0 0
      %1490 = vmatpush2.bf16.xpose.msra.mxu0 0
      %1491 = vmatprep.subr.bf16.mxu0 0
      %1492 = vmatpush2.bf16.xpose.msra.mxu0 0
      %1493 = vmatprep.subr.bf16.mxu0 0
      %1494 = vmatpush2.bf16.xpose.msra.mxu0 0
      %1495 = vmatprep.subr.bf16.mxu0 0
      %1496 = vmatpush2.bf16.xpose.msra.mxu0 0
      %1497 = vmatprep.subr.bf16.mxu0 0
      %1498 = vmatpush2.bf16.xpose.msra.mxu0 0
      %1499 = vmatprep.subr.bf16.mxu0 0
      %1500 = vmatpush2.bf16.xpose.msra.mxu0 0
      %1501 = vmatprep.mubr.bf16.mxu0 0
      %1502 = vmatmul.mubr.bf16.gmra.mxu0 %v1458
      %v1503 = vpop.f32.mrf.mxu0
      %v1504 = vadd.f32 0.0, %v1503
      %v1505 = vpop.f32.mrf.mxu0
      %v1506 = vpop.f32.mrf.mxu0
      %v1507 = vadd.f32 0.0, %v1506
      %v1508 = vpop.f32.mrf.mxu0
      %1509 = vmatprep.mubr.bf16.mxu0 0
      %1510 = vmatmul.mubr.bf16.gmra.mxu0 %v1461
      %v1511 = vpop.f32.mrf.mxu0
      %v1512 = vadd.f32 0.0, %v1511
      %v1513 = vpop.f32.mrf.mxu0
      %v1514 = vpop.f32.mrf.mxu0
      %v1515 = vpop.f32.mrf.mxu0
      %1516 = vdwg.mxu0
      %v1517 = vmul.f32 %v1504, 0.35355338
      %v1518 = vmul.f32 %v1507, 0.35355338
      %v1519 = vmul.f32 %v1512, 0.35355338
      %v1520 = vsel %vm932, %v1517, -1e+30
      %v1521 = vsel %vm932, %v1518, -1e+30
      %v1522 = vsel %vm932, %v1519, -1e+30
      %v1523 = vsel %vm1008, %v1520, -inf
      %1524 = vmax.xlane.f32.xlu0 %v1523
      %v1525 = vpop.xlane.xlu0 %1524
      %v1526 = vsel %vm1008, %v1521, -inf
      %1527 = vmax.xlane.f32.xlu0 %v1526
      %v1528 = vpop.xlane.xlu0 %1527
      %v1529 = vsel %vm1008, %v1522, -inf
      %1530 = vmax.xlane.f32.xlu0 %v1529
      %v1531 = vpop.xlane.xlu0 %1530
      %v1532 = vsub.f32 %v1520, %v1525
      %v1533 = vsub.f32 %v1521, %v1528
      %v1534 = vsub.f32 %v1522, %v1531
      %v1535 = vmul.f32 %v1532, 1.442695
      %v1536 = vpow.pop %v1535
      %v1537 = vmul.f32 %v1533, 1.442695
      %v1538 = vpow.pop %v1537
      %v1539 = vmul.f32 %v1534, 1.442695
      %v1540 = vpow.pop %v1539
      %v1541 = vsel %vm1008, %v1536, 0.0
      %1542 = vadd.xlane.f32.xlu0 %v1541
      %v1543 = vpop.xlane.xlu0 %1542
      %v1544 = vsel %vm1008, %v1538, 0.0
      %1545 = vadd.xlane.f32.xlu0 %v1544
      %v1546 = vpop.xlane.xlu0 %1545
      %v1547 = vsel %vm1008, %v1540, 0.0
      %1548 = vadd.xlane.f32.xlu0 %v1547
      %v1549 = vpop.xlane.xlu0 %1548
      %v1550 = vrcp.pop %v1543
      %v1551 = vrcp.pop %v1546
      %v1552 = vrcp.pop %v1549
      %v1553 = vmul.f32 %v1536, %v1550
      %v1554 = vmul.f32 %v1538, %v1551
      %v1555 = vmul.f32 %v1540, %v1552
      %v1556 = vpack.c.bf16 %v1554, %v1553
      %v1557 = vpack.c.bf16 %v1555, %v1555
      %1558 = vrot.lane.b32.xlu0 %v933, 40
      %v1559 = vpop.permute.xlu0 %1558
      %1560 = vrot.lane.b32.xlu0 %v934, 40
      %v1561 = vpop.permute.xlu0 %1560
      %v1564 = vsel %vm1008, %v1556, 0
      %v1567 = vsel %vm1008, %v1557, 0
      %v1570 = vsel %vm1055, %v1561, 0
      %1572 = vmatprep.subr.bf16.mxu0 0
      %1573 = vmatpush1.bf16.msra.mxu0 0
      %1574 = vmatprep.subr.bf16.mxu0 0
      %1575 = vmatpush1.bf16.msra.mxu0 0
      %1576 = vmatprep.subr.bf16.mxu0 0
      %1577 = vmatpush1.bf16.msra.mxu0 0
      %1578 = vmatprep.subr.bf16.mxu0 0
      %1579 = vmatpush1.bf16.msra.mxu0 0
      %1580 = vmatprep.subr.bf16.mxu0 0
      %1581 = vmatpush1.bf16.msra.mxu0 0
      %1582 = vmatprep.subr.bf16.mxu0 0
      %1583 = vmatpush1.bf16.msra.mxu0 0
      %1584 = vmatprep.subr.bf16.mxu0 0
      %1585 = vmatpush1.bf16.msra.mxu0 %v1570
      %1586 = vmatprep.subr.bf16.mxu0 0
      %1587 = vmatpush1.bf16.msra.mxu0 %v1559
      %1588 = vmatprep.subr.bf16.mxu0 0
      %1589 = vmatpush2.bf16.msra.mxu0 0
      %1590 = vmatprep.subr.bf16.mxu0 0
      %1591 = vmatpush2.bf16.msra.mxu0 0
      %1592 = vmatprep.subr.bf16.mxu0 0
      %1593 = vmatpush2.bf16.msra.mxu0 0
      %1594 = vmatprep.subr.bf16.mxu0 0
      %1595 = vmatpush2.bf16.msra.mxu0 0
      %1596 = vmatprep.subr.bf16.mxu0 0
      %1597 = vmatpush2.bf16.msra.mxu0 0
      %1598 = vmatprep.subr.bf16.mxu0 0
      %1599 = vmatpush2.bf16.msra.mxu0 0
      %1600 = vmatprep.subr.bf16.mxu0 0
      %1601 = vmatpush2.bf16.msra.mxu0 0
      %1602 = vmatprep.subr.bf16.mxu0 0
      %1603 = vmatpush2.bf16.msra.mxu0 0
      %1604 = vmatprep.mubr.bf16.mxu0 0
      %1605 = vmatmul.mubr.bf16.gmra.mxu0 %v1564
      %v1606 = vpop.f32.mrf.mxu0
      %v1607 = vadd.f32 0.0, %v1606
      %v1608 = vpop.f32.mrf.mxu0
      %v1609 = vpop.f32.mrf.mxu0
      %v1610 = vadd.f32 0.0, %v1609
      %v1611 = vpop.f32.mrf.mxu0
      %1612 = vmatprep.mubr.bf16.mxu0 0
      %1613 = vmatmul.mubr.bf16.gmra.mxu0 %v1567
      %v1614 = vpop.f32.mrf.mxu0
      %v1615 = vadd.f32 0.0, %v1614
      %v1616 = vpop.f32.mrf.mxu0
      %v1617 = vpop.f32.mrf.mxu0
      %v1618 = vpop.f32.mrf.mxu0
      %1619 = vdwg.mxu0
      %1623 = vrot.lane.b32.xlu0 %v1265, 8
      %v1624 = vpop.permute.xlu0 %1623
      %1625 = vrot.lane.b32.xlu0 %v1268, 8
      %v1626 = vpop.permute.xlu0 %1625
      %1627 = vrot.lane.b32.xlu0 %v1273, 8
      %v1628 = vpop.permute.xlu0 %1627
      %1635 = vrot.lane.b32.xlu0 %v1436, 16
      %v1636 = vpop.permute.xlu0 %1635
      %1637 = vrot.lane.b32.xlu0 %v1439, 16
      %v1638 = vpop.permute.xlu0 %1637
      %1639 = vrot.lane.b32.xlu0 %v1444, 16
      %v1640 = vpop.permute.xlu0 %1639
      %1647 = vrot.lane.b32.xlu0 %v1607, 24
      %v1648 = vpop.permute.xlu0 %1647
      %1649 = vrot.lane.b32.xlu0 %v1610, 24
      %v1650 = vpop.permute.xlu0 %1649
      %1651 = vrot.lane.b32.xlu0 %v1615, 24
      %v1652 = vpop.permute.xlu0 %1651
      %v1656 = vsel %vm941, %v1094, %v1624
      %v1657 = vsel %vm941, %v1097, %v1626
      %v1658 = vsel %vm941, %v1102, %v1628
      %vm1659 = vcmask 130048
      %v1660 = vsel %vm1659, %v1656, %v1636
      %v1661 = vsel %vm1659, %v1657, %v1638
      %v1662 = vsel %vm1659, %v1658, %v1640
      %v1663 = vsel %vm1008, %v1660, %v1648
      %v1664 = vsel %vm1008, %v1661, %v1650
      %v1665 = vsel %vm1008, %v1662, %v1652
      %v1666 = vpack.c.bf16 %v1664, %v1663
      %v1667 = vpack.c.bf16 %v1665, %v1665
      %v1668 = vld [vmem:[%s8] sm:$0xf]
      %v1669 = vld [vmem:[%s8 + $0x4] sm:$0xf]
      %v1670 = vld [vmem:[%s8 + $0x8] sm:$0xf]
      %v1671 = vld [vmem:[%s8 + $0xc] sm:$0xf]
      %v1672 = vld [vmem:[%s9] sm:$0x1]
      %v1674 = vlaneseq
      %v1675 = vshrl.u32 %v1674, 7
      %v1676 = vsub.s32 0, %v1675
      %v1677 = vrot.slane %v1672, %v1676
      %v1683 = vunpack.c.l.b16 %v1668
      %v1684 = vunpack.c.l.b16 %v1669
      %v1685 = vunpack.c.l.b16 %v1670
      %v1686 = vunpack.c.l.b16 %v1671
      %v1687 = vpack.c.b16 %v1684, %v1683
      %v1688 = vpack.c.b16 %v1686, %v1685
      %v1692 = vsel %vm792, %v1666, 0
      %v1695 = vsel %vm792, %v1667, 0
      %1697 = vmatprep.subr.bf16.mxu0 0
      %1698 = vmatpush1.bf16.msra.mxu0 0
      %1699 = vmatprep.subr.bf16.mxu0 0
      %1700 = vmatpush1.bf16.msra.mxu0 0
      %1701 = vmatprep.subr.bf16.mxu0 0
      %1702 = vmatpush1.bf16.msra.mxu0 0
      %1703 = vmatprep.subr.bf16.mxu0 0
      %1704 = vmatpush1.bf16.msra.mxu0 0
      %1705 = vmatprep.subr.bf16.mxu0 0
      %1706 = vmatpush1.bf16.msra.mxu0 0
      %1707 = vmatprep.subr.bf16.mxu0 0
      %1708 = vmatpush1.bf16.msra.mxu0 0
      %1709 = vmatprep.subr.bf16.mxu0 0
      %1710 = vmatpush1.bf16.msra.mxu0 %v1688
      %1711 = vmatprep.subr.bf16.mxu0 0
      %1712 = vmatpush1.bf16.msra.mxu0 %v1687
      %1713 = vmatprep.subr.bf16.mxu0 0
      %1714 = vmatpush2.bf16.msra.mxu0 0
      %1715 = vmatprep.subr.bf16.mxu0 0
      %1716 = vmatpush2.bf16.msra.mxu0 0
      %1717 = vmatprep.subr.bf16.mxu0 0
      %1718 = vmatpush2.bf16.msra.mxu0 0
      %1719 = vmatprep.subr.bf16.mxu0 0
      %1720 = vmatpush2.bf16.msra.mxu0 0
      %1721 = vmatprep.subr.bf16.mxu0 0
      %1722 = vmatpush2.bf16.msra.mxu0 0
      %1723 = vmatprep.subr.bf16.mxu0 0
      %1724 = vmatpush2.bf16.msra.mxu0 0
      %1725 = vmatprep.subr.bf16.mxu0 0
      %1726 = vmatpush2.bf16.msra.mxu0 0
      %1727 = vmatprep.subr.bf16.mxu0 0
      %1728 = vmatpush2.bf16.msra.mxu0 0
      %1729 = vmatprep.mubr.bf16.mxu0 0
      %1730 = vmatmul.mubr.bf16.gmra.mxu0 %v1692
      %v1731 = vpop.f32.mrf.mxu0
      %v1732 = vadd.f32 %v1677, %v1731
      %v1733 = vpop.f32.mrf.mxu0
      %v1734 = vpop.f32.mrf.mxu0
      %v1735 = vadd.f32 %v1677, %v1734
      %v1736 = vpop.f32.mrf.mxu0
      %1737 = vmatprep.mubr.bf16.mxu0 0
      %1738 = vmatmul.mubr.bf16.gmra.mxu0 %v1695
      %v1739 = vpop.f32.mrf.mxu0
      %v1740 = vadd.f32 %v1677, %v1739
      %v1741 = vpop.f32.mrf.mxu0
      %v1742 = vpop.f32.mrf.mxu0
      %v1743 = vpop.f32.mrf.mxu0
      %1744 = vdwg.mxu0
      %v1745 = vadd.f32 %v788, %v1732
      %v1746 = vadd.f32 %v789, %v1735
      %v1747 = vadd.f32 %v787, %v1740
      %v1748 = vld [vmem:[%s10] sm:$0x1]
      %v1749 = vld [vmem:[%s11] sm:$0x1]
      %v1750 = vsel %vm792, %v1745, 0.0
      %1751 = vadd.xlane.f32.xlu0 %v1750
      %v1752 = vpop.xlane.xlu0 %1751
      %v1753 = vsel %vm792, %v1746, 0.0
      %1754 = vadd.xlane.f32.xlu0 %v1753
      %v1755 = vpop.xlane.xlu0 %1754
      %v1756 = vsel %vm792, %v1747, 0.0
      %1757 = vadd.xlane.f32.xlu0 %v1756
      %v1758 = vpop.xlane.xlu0 %1757
      %v1759 = vmul.f32 %v1752, %v802
      %v1760 = vmul.f32 %v1755, %v802
      %v1761 = vmul.f32 %v1758, %v802
      %v1762 = vsub.f32 %v1745, %v1759
      %v1763 = vsub.f32 %v1746, %v1760
      %v1764 = vsub.f32 %v1747, %v1761
      %v1765 = vmul.f32 %v1762, %v1762
      %v1766 = vmul.f32 %v1763, %v1763
      %v1767 = vmul.f32 %v1764, %v1764
      %v1768 = vsel %vm792, %v1765, 0.0
      %1769 = vadd.xlane.f32.xlu0 %v1768
      %v1770 = vpop.xlane.xlu0 %1769
      %v1771 = vsel %vm792, %v1766, 0.0
      %1772 = vadd.xlane.f32.xlu0 %v1771
      %v1773 = vpop.xlane.xlu0 %1772
      %v1774 = vsel %vm792, %v1767, 0.0
      %1775 = vadd.xlane.f32.xlu0 %v1774
      %v1776 = vpop.xlane.xlu0 %1775
      %v1777 = vmul.f32 %v1770, %v802
      %v1778 = vmul.f32 %v1773, %v802
      %v1779 = vmul.f32 %v1776, %v802
      %v1780 = vadd.f32 %v1777, 1e-06
      %v1781 = vadd.f32 %v1778, 1e-06
      %v1782 = vadd.f32 %v1779, 1e-06
      %v1783 = vrsqrt.pop %v1780
      %v1784 = vrsqrt.pop %v1781
      %v1785 = vrsqrt.pop %v1782
      %v1786 = vmul.f32 %v1762, %v1783
      %v1787 = vmul.f32 %v1763, %v1784
      %v1788 = vmul.f32 %v1764, %v1785
      %v1790 = vlaneseq
      %v1791 = vshrl.u32 %v1790, 7
      %v1792 = vsub.s32 0, %v1791
      %v1793 = vrot.slane %v1748, %v1792
      %v1795 = vmul.f32 %v1786, %v1793
      %v1796 = vmul.f32 %v1787, %v1793
      %v1797 = vmul.f32 %v1788, %v1793
      %v1799 = vlaneseq
      %v1800 = vshrl.u32 %v1799, 7
      %v1801 = vsub.s32 0, %v1800
      %v1802 = vrot.slane %v1749, %v1801
      %v1804 = vadd.f32 %v1795, %v1802
      %v1805 = vadd.f32 %v1796, %v1802
      %v1806 = vadd.f32 %v1797, %v1802
      %v1807 = vpack.c.bf16 %v1805, %v1804
      %v1808 = vpack.c.bf16 %v1806, %v1806
      %v1809 = vld [vmem:[%s12] sm:$0xf]
      %v1810 = vld [vmem:[%s12 + $0x4] sm:$0xf]
      %v1811 = vld [vmem:[%s12 + $0x8] sm:$0xf]
      %v1812 = vld [vmem:[%s12 + $0xc] sm:$0xf]
      %v1813 = vld [vmem:[%s13] sm:$0x1]
      %v1815 = vlaneseq
      %v1816 = vshrl.u32 %v1815, 7
      %v1817 = vsub.s32 0, %v1816
      %v1818 = vrot.slane %v1813, %v1817
      %v1824 = vunpack.c.l.b16 %v1809
      %v1825 = vunpack.c.l.b16 %v1810
      %v1826 = vunpack.c.l.b16 %v1811
      %v1827 = vunpack.c.l.b16 %v1812
      %v1828 = vpack.c.b16 %v1825, %v1824
      %v1829 = vpack.c.b16 %v1827, %v1826
      %v1833 = vsel %vm792, %v1807, 0
      %v1836 = vsel %vm792, %v1808, 0
      %1838 = vmatprep.subr.bf16.mxu0 0
      %1839 = vmatpush1.bf16.msra.mxu0 0
      %1840 = vmatprep.subr.bf16.mxu0 0
      %1841 = vmatpush1.bf16.msra.mxu0 0
      %1842 = vmatprep.subr.bf16.mxu0 0
      %1843 = vmatpush1.bf16.msra.mxu0 0
      %1844 = vmatprep.subr.bf16.mxu0 0
      %1845 = vmatpush1.bf16.msra.mxu0 0
      %1846 = vmatprep.subr.bf16.mxu0 0
      %1847 = vmatpush1.bf16.msra.mxu0 0
      %1848 = vmatprep.subr.bf16.mxu0 0
      %1849 = vmatpush1.bf16.msra.mxu0 0
      %1850 = vmatprep.subr.bf16.mxu0 0
      %1851 = vmatpush1.bf16.msra.mxu0 %v1829
      %1852 = vmatprep.subr.bf16.mxu0 0
      %1853 = vmatpush1.bf16.msra.mxu0 %v1828
      %1854 = vmatprep.subr.bf16.mxu0 0
      %1855 = vmatpush2.bf16.msra.mxu0 0
      %1856 = vmatprep.subr.bf16.mxu0 0
      %1857 = vmatpush2.bf16.msra.mxu0 0
      %1858 = vmatprep.subr.bf16.mxu0 0
      %1859 = vmatpush2.bf16.msra.mxu0 0
      %1860 = vmatprep.subr.bf16.mxu0 0
      %1861 = vmatpush2.bf16.msra.mxu0 0
      %1862 = vmatprep.subr.bf16.mxu0 0
      %1863 = vmatpush2.bf16.msra.mxu0 0
      %1864 = vmatprep.subr.bf16.mxu0 0
      %1865 = vmatpush2.bf16.msra.mxu0 0
      %1866 = vmatprep.subr.bf16.mxu0 0
      %1867 = vmatpush2.bf16.msra.mxu0 0
      %1868 = vmatprep.subr.bf16.mxu0 0
      %1869 = vmatpush2.bf16.msra.mxu0 0
      %1870 = vmatprep.mubr.bf16.mxu0 0
      %1871 = vmatmul.mubr.bf16.gmra.mxu0 %v1833
      %v1872 = vpop.f32.mrf.mxu0
      %v1873 = vadd.f32 %v1818, %v1872
      %v1874 = vpop.f32.mrf.mxu0
      %v1875 = vpop.f32.mrf.mxu0
      %v1876 = vadd.f32 %v1818, %v1875
      %v1877 = vpop.f32.mrf.mxu0
      %1878 = vmatprep.mubr.bf16.mxu0 0
      %1879 = vmatmul.mubr.bf16.gmra.mxu0 %v1836
      %v1880 = vpop.f32.mrf.mxu0
      %v1881 = vadd.f32 %v1818, %v1880
      %v1882 = vpop.f32.mrf.mxu0
      %v1883 = vpop.f32.mrf.mxu0
      %v1884 = vpop.f32.mrf.mxu0
      %1885 = vdwg.mxu0
      %v1886 = vmul.f32 %v1873, %v1873
      %v1887 = vmul.f32 %v1876, %v1876
      %v1888 = vmul.f32 %v1881, %v1881
      %v1889 = vmul.f32 %v1873, %v1886
      %v1890 = vmul.f32 %v1876, %v1887
      %v1891 = vmul.f32 %v1881, %v1888
      %v1892 = vmul.f32 %v1889, 0.044715
      %v1893 = vmul.f32 %v1890, 0.044715
      %v1894 = vmul.f32 %v1891, 0.044715
      %v1895 = vadd.f32 %v1873, %v1892
      %v1896 = vadd.f32 %v1876, %v1893
      %v1897 = vadd.f32 %v1881, %v1894
      %v1898 = vmul.f32 %v1895, 0.7978846
      %v1899 = vmul.f32 %v1896, 0.7978846
      %v1900 = vmul.f32 %v1897, 0.7978846
      %v1901 = vtanh.pop %v1898
      %v1902 = vtanh.pop %v1899
      %v1903 = vtanh.pop %v1900
      %v1904 = vadd.f32 %v1901, 1.0
      %v1905 = vadd.f32 %v1902, 1.0
      %v1906 = vadd.f32 %v1903, 1.0
      %v1907 = vmul.f32 %v1904, 0.5
      %v1908 = vmul.f32 %v1905, 0.5
      %v1909 = vmul.f32 %v1906, 0.5
      %v1910 = vmul.f32 %v1873, %v1907
      %v1911 = vmul.f32 %v1876, %v1908
      %v1912 = vmul.f32 %v1881, %v1909
      %v1913 = vpack.c.bf16 %v1911, %v1910
      %v1914 = vpack.c.bf16 %v1912, %v1912
      %v1915 = vld [vmem:[%s14] sm:$0xf]
      %v1916 = vld [vmem:[%s14 + $0x4] sm:$0xf]
      %v1917 = vld [vmem:[%s14 + $0x8] sm:$0xf]
      %v1918 = vld [vmem:[%s14 + $0xc] sm:$0xf]
      %v1919 = vld [vmem:[%s14 + $0x10] sm:$0xf]
      %v1920 = vld [vmem:[%s14 + $0x14] sm:$0xf]
      %v1921 = vld [vmem:[%s14 + $0x18] sm:$0xf]
      %v1922 = vld [vmem:[%s14 + $0x1c] sm:$0xf]
      %v1923 = vld [vmem:[%s15] sm:$0x1]
      %v1925 = vlaneseq
      %v1926 = vshrl.u32 %v1925, 7
      %v1927 = vsub.s32 0, %v1926
      %v1928 = vrot.slane %v1923, %v1927
      %v1938 = vunpack.c.l.b16 %v1915
      %v1939 = vunpack.c.l.b16 %v1916
      %v1940 = vunpack.c.l.b16 %v1917
      %v1941 = vunpack.c.l.b16 %v1918
      %v1942 = vunpack.c.l.b16 %v1919
      %v1943 = vunpack.c.l.b16 %v1920
      %v1944 = vunpack.c.l.b16 %v1921
      %v1945 = vunpack.c.l.b16 %v1922
      %v1946 = vpack.c.b16 %v1939, %v1938
      %v1947 = vpack.c.b16 %v1941, %v1940
      %v1948 = vpack.c.b16 %v1943, %v1942
      %v1949 = vpack.c.b16 %v1945, %v1944
      %v1955 = vsel %vm740, %v1913, 0
      %v1958 = vsel %vm740, %v1914, 0
      %1960 = vmatprep.subr.bf16.mxu0 0
      %1961 = vmatpush1.bf16.msra.mxu0 0
      %1962 = vmatprep.subr.bf16.mxu0 0
      %1963 = vmatpush1.bf16.msra.mxu0 0
      %1964 = vmatprep.subr.bf16.mxu0 0
      %1965 = vmatpush1.bf16.msra.mxu0 0
      %1966 = vmatprep.subr.bf16.mxu0 0
      %1967 = vmatpush1.bf16.msra.mxu0 0
      %1968 = vmatprep.subr.bf16.mxu0 0
      %1969 = vmatpush1.bf16.msra.mxu0 %v1949
      %1970 = vmatprep.subr.bf16.mxu0 0
      %1971 = vmatpush1.bf16.msra.mxu0 %v1948
      %1972 = vmatprep.subr.bf16.mxu0 0
      %1973 = vmatpush1.bf16.msra.mxu0 %v1947
      %1974 = vmatprep.subr.bf16.mxu0 0
      %1975 = vmatpush1.bf16.msra.mxu0 %v1946
      %1976 = vmatprep.subr.bf16.mxu0 0
      %1977 = vmatpush2.bf16.msra.mxu0 0
      %1978 = vmatprep.subr.bf16.mxu0 0
      %1979 = vmatpush2.bf16.msra.mxu0 0
      %1980 = vmatprep.subr.bf16.mxu0 0
      %1981 = vmatpush2.bf16.msra.mxu0 0
      %1982 = vmatprep.subr.bf16.mxu0 0
      %1983 = vmatpush2.bf16.msra.mxu0 0
      %1984 = vmatprep.subr.bf16.mxu0 0
      %1985 = vmatpush2.bf16.msra.mxu0 0
      %1986 = vmatprep.subr.bf16.mxu0 0
      %1987 = vmatpush2.bf16.msra.mxu0 0
      %1988 = vmatprep.subr.bf16.mxu0 0
      %1989 = vmatpush2.bf16.msra.mxu0 0
      %1990 = vmatprep.subr.bf16.mxu0 0
      %1991 = vmatpush2.bf16.msra.mxu0 0
      %1992 = vmatprep.mubr.bf16.mxu0 0
      %1993 = vmatmul.mubr.bf16.gmra.mxu0 %v1955
      %v1994 = vpop.f32.mrf.mxu0
      %v1995 = vadd.f32 %v1928, %v1994
      %v1996 = vpop.f32.mrf.mxu0
      %v1997 = vpop.f32.mrf.mxu0
      %v1998 = vadd.f32 %v1928, %v1997
      %v1999 = vpop.f32.mrf.mxu0
      %2000 = vmatprep.mubr.bf16.mxu0 0
      %2001 = vmatmul.mubr.bf16.gmra.mxu0 %v1958
      %v2002 = vpop.f32.mrf.mxu0
      %v2003 = vpop.f32.mrf.mxu0
      %v2004 = vpop.f32.mrf.mxu0
      %v2005 = vpop.f32.mrf.mxu0
      %2006 = vdwg.mxu0
      %v2007 = vadd.f32 %v1745, %v1995
      %v2008 = vadd.f32 %v1746, %v1998
      %v2009 = vld [vmem:[%s16] sm:$0x1]
      %v2010 = vld [vmem:[%s17] sm:$0x1]
      %v2011 = vsel %vm792, %v2007, 0.0
      %2012 = vadd.xlane.f32.xlu0 %v2011
      %v2013 = vpop.xlane.xlu0 %2012
      %v2014 = vsel %vm792, %v2008, 0.0
      %2015 = vadd.xlane.f32.xlu0 %v2014
      %v2016 = vpop.xlane.xlu0 %2015
      %v2017 = vmul.f32 %v2013, %v802
      %v2018 = vmul.f32 %v2016, %v802
      %v2019 = vsub.f32 %v2007, %v2017
      %v2020 = vsub.f32 %v2008, %v2018
      %v2021 = vmul.f32 %v2019, %v2019
      %v2022 = vmul.f32 %v2020, %v2020
      %v2023 = vsel %vm792, %v2021, 0.0
      %2024 = vadd.xlane.f32.xlu0 %v2023
      %v2025 = vpop.xlane.xlu0 %2024
      %v2026 = vsel %vm792, %v2022, 0.0
      %2027 = vadd.xlane.f32.xlu0 %v2026
      %v2028 = vpop.xlane.xlu0 %2027
      %v2029 = vmul.f32 %v2025, %v802
      %v2030 = vmul.f32 %v2028, %v802
      %v2031 = vadd.f32 %v2029, 1e-06
      %v2032 = vadd.f32 %v2030, 1e-06
      %v2033 = vrsqrt.pop %v2031
      %v2034 = vrsqrt.pop %v2032
      %v2035 = vmul.f32 %v2019, %v2033
      %v2036 = vmul.f32 %v2020, %v2034
      %v2038 = vlaneseq
      %v2039 = vshrl.u32 %v2038, 7
      %v2040 = vsub.s32 0, %v2039
      %v2041 = vrot.slane %v2009, %v2040
      %v2043 = vmul.f32 %v2035, %v2041
      %v2044 = vmul.f32 %v2036, %v2041
      %v2046 = vlaneseq
      %v2047 = vshrl.u32 %v2046, 7
      %v2048 = vsub.s32 0, %v2047
      %v2049 = vrot.slane %v2010, %v2048
      %v2051 = vadd.f32 %v2043, %v2049
      %v2052 = vadd.f32 %v2044, %v2049
      %v2053 = vpack.c.bf16 %v2052, %v2051
      %v2054 = vld [vmem:[%s18] sm:$0xf]
      %v2055 = vld [vmem:[%s18 + $0x4] sm:$0xf]
      %v2056 = vld [vmem:[%s18 + $0x8] sm:$0xf]
      %v2057 = vld [vmem:[%s18 + $0xc] sm:$0xf]
      %v2058 = vld [vmem:[%s19] sm:$0x1]
      %v2060 = vlaneseq
      %v2061 = vshrl.u32 %v2060, 7
      %v2062 = vsub.s32 0, %v2061
      %v2063 = vrot.slane %v2058, %v2062
      %v2069 = vunpack.c.l.b16 %v2054
      %v2070 = vunpack.c.l.b16 %v2055
      %v2071 = vunpack.c.l.b16 %v2056
      %v2072 = vunpack.c.l.b16 %v2057
      %v2073 = vpack.c.b16 %v2070, %v2069
      %v2074 = vpack.c.b16 %v2072, %v2071
      %v2078 = vsel %vm792, %v2053, 0
      %2080 = vmatprep.subr.bf16.mxu0 0
      %2081 = vmatpush1.bf16.msra.mxu0 0
      %2082 = vmatprep.subr.bf16.mxu0 0
      %2083 = vmatpush1.bf16.msra.mxu0 0
      %2084 = vmatprep.subr.bf16.mxu0 0
      %2085 = vmatpush1.bf16.msra.mxu0 0
      %2086 = vmatprep.subr.bf16.mxu0 0
      %2087 = vmatpush1.bf16.msra.mxu0 0
      %2088 = vmatprep.subr.bf16.mxu0 0
      %2089 = vmatpush1.bf16.msra.mxu0 0
      %2090 = vmatprep.subr.bf16.mxu0 0
      %2091 = vmatpush1.bf16.msra.mxu0 0
      %2092 = vmatprep.subr.bf16.mxu0 0
      %2093 = vmatpush1.bf16.msra.mxu0 %v2074
      %2094 = vmatprep.subr.bf16.mxu0 0
      %2095 = vmatpush1.bf16.msra.mxu0 %v2073
      %2096 = vmatprep.subr.bf16.mxu0 0
      %2097 = vmatpush2.bf16.msra.mxu0 0
      %2098 = vmatprep.subr.bf16.mxu0 0
      %2099 = vmatpush2.bf16.msra.mxu0 0
      %2100 = vmatprep.subr.bf16.mxu0 0
      %2101 = vmatpush2.bf16.msra.mxu0 0
      %2102 = vmatprep.subr.bf16.mxu0 0
      %2103 = vmatpush2.bf16.msra.mxu0 0
      %2104 = vmatprep.subr.bf16.mxu0 0
      %2105 = vmatpush2.bf16.msra.mxu0 0
      %2106 = vmatprep.subr.bf16.mxu0 0
      %2107 = vmatpush2.bf16.msra.mxu0 0
      %2108 = vmatprep.subr.bf16.mxu0 0
      %2109 = vmatpush2.bf16.msra.mxu0 0
      %2110 = vmatprep.subr.bf16.mxu0 0
      %2111 = vmatpush2.bf16.msra.mxu0 0
      %2112 = vmatprep.mubr.bf16.mxu0 0
      %2113 = vmatmul.mubr.bf16.gmra.mxu0 %v2078
      %v2114 = vpop.f32.mrf.mxu0
      %v2115 = vadd.f32 %v2063, %v2114
      %v2116 = vpop.f32.mrf.mxu0
      %v2117 = vpop.f32.mrf.mxu0
      %v2118 = vadd.f32 %v2063, %v2117
      %v2119 = vpop.f32.mrf.mxu0
      %2120 = vdwg.mxu0
      %2121 = vst [vmem:[%s629] sm:$0xff] %v2115
      %2122 = vst [vmem:[%s629 + $0x8] sm:$0xff] %v2118
      %p2123 = scmp.lt.s32.totalorder %s31, 1
      %s2124 = scalar_select %p2123, %s31, 1
      %s2125 = smul.addr %s2124, 2
      %s2126 = smul.addr %s2125, 8
      %s2127 = scalar_lea.vmem %s20, %s2126
      // Predicated region
      $region101: #{encoder_decoder_forward.1} parent=99 // pred_check
        %p2128 = pneg %p474
      $region102: #{encoder_decoder_forward.1} parent=99 // pred_check_branch
        %2130 = sbr.rel (%p2128) target = $region104
      $region103: #{encoder_decoder_forward.1} parent=99 // pred_region
        _
      $region104: #{encoder_decoder_forward.1} parent=99 // pred_fallthru
        _
    $region100: #{encoder_decoder_forward.1} parent=5 // pred_fallthru
      _
    %p2131 = scmp.le.s32.totalorder 2, %s26
    // Predicated region
    $region105: #{encoder_decoder_forward.1} parent=5 // pred_check
      %p2132 = pneg %p2131
    $region106: #{encoder_decoder_forward.1} parent=5 // pred_check_branch
      %2134 = sbr.rel (%p2132) target = $region108
    $region107: #{encoder_decoder_forward.1} parent=5 // pred_region
      %s2135 = ssub.s32 %s26, 2
      // Predicated region
      $region109: #{encoder_decoder_forward.1} parent=107 // pred_check
        %p2136 = pneg %p480
      $region110: #{encoder_decoder_forward.1} parent=107 // pred_check_branch
        %2138 = sbr.rel (%p2136) target = $region112
      $region111: #{encoder_decoder_forward.1} parent=107 // pred_region
        %p2139 = scmp.lt.s32.totalorder %s32, 1
        %s2140 = scalar_select %p2139, %s32, 1
        %s2141 = smul.addr %s2140, 2
        %s2142 = smul.addr %s2141, 8
        %s2143 = scalar_lea.vmem %s20, %s2142
      $region112: #{encoder_decoder_forward.1} parent=107 // pred_fallthru
        _
    $region108: #{encoder_decoder_forward.1} parent=5 // pred_fallthru
      _
  $region6: #{encoder_decoder_forward.1} parent=0 // loop_footer
    %s30 = sadd.s32 1, %s26
  $region7: #{encoder_decoder_forward.1} parent=0 // loop_footer_branch
    %25 = sbr.rel target = $region3
  $region8: #{encoder_decoder_forward.1} parent=0 // loop_exit
    _

</llo_original>
